<compile_context>
chip_gen: v7x
topology: tpu7x:2x2x1
jax: 0.10.0
libtpu: 0.0.40
codegen_flags: <defaults>
</compile_context>

<pallas_src>
import functools

import jax
import jax.numpy as jnp
from jax import lax
from jax.experimental import pallas as pl
from jax.experimental.pallas import tpu as pltpu


# Contract lhs axis 0 with rhs axis 0 (i.e. x^T @ w) -- lets the kernel consume
# channels-major tiles without a wrapper-side transpose of the activations.
_LHS_T_DIMS = (((0,), (0,)), ((), ()))


def _seg_kernel(x_ref,
                w1_ref, t1_ref,
                w2_ref, t2_ref,
                w3_ref, t3_ref,
                o_ref):
    """Fused (conv1x1 -> BN -> ReLU) x 3 on one tile of points.

    x_ref : (1, Cin, TN)  bf16  channels-major tile of points
    wK    : (CinK, CoutK) bf16  conv weights with BN scale folded into columns
    tK    : (1, CoutK)    f32   conv bias + BN shift folded
    o_ref : (1, TN, Cout)       output tile (points-major, lane-dense)
    """
    x = x_ref[0]  # (Cin, TN) bf16

    # layer 1: conv1 -> bn1 -> relu   (dropout = identity in eval mode)
    h = lax.dot_general(x, w1_ref[...], _LHS_T_DIMS,
                        preferred_element_type=jnp.float32)      # (TN, of1)
    h = jnp.maximum(h + t1_ref[...], 0.0)

    # layer 2: conv2 -> bn2 -> relu   (dropout = identity in eval mode)
    h = jnp.dot(h.astype(jnp.bfloat16), w2_ref[...],
                preferred_element_type=jnp.float32)               # (TN, of2)
    h = jnp.maximum(h + t2_ref[...], 0.0)

    # layer 3: conv3 -> bn3 -> relu
    h = jnp.dot(h.astype(jnp.bfloat16), w3_ref[...],
                preferred_element_type=jnp.float32)               # (TN, Cout)
    h = jnp.maximum(h + t3_ref[...], 0.0)

    o_ref[0] = h.astype(o_ref.dtype)


def _round_up(x, m):
    return ((x + m - 1) // m) * m


def _fold_params(params):
    """Fold conv bias + inference-mode BN into per-layer (bf16 weight, f32 shift)."""
    (w1, b1, s1, t1, w2, b2, s2, t2, w3, b3, s3, t3) = params

    def fold(w, b, s, t):
        w_f = (w.astype(jnp.float32) * s).astype(jnp.bfloat16)   # column scale
        t_f = (t + b * s).astype(jnp.float32)                    # bias + shift
        return w_f, t_f

    w1f, t1f = fold(w1, b1, s1, t1)
    w2f, t2f = fold(w2, b2, s2, t2)
    w3f, t3f = fold(w3, b3, s3, t3)
    return w1f, t1f, w2f, t2f, w3f, t3f


@functools.partial(jax.jit, static_argnames=("tn",))
def segmentation_forward(x, params, *, tn=1024):
    """x: (B, Cin, N) f32 -> (B, N, Cout) f32 (== PyTorch out.permute(0, 2, 1))."""
    w1f, t1f, w2f, t2f, w3f, t3f = _fold_params(params)
    B, Cin, N = x.shape
    Cout = w3f.shape[1]

    # Point tile: lane-dense multiple of 128 (256-aligned by default), capped by
    # the requested tn; ragged N is padded to the tile and sliced off afterwards.
    tile = min(_round_up(tn, 128), _round_up(N, 128))
    n_pad = _round_up(N, tile)

    xb = x.astype(jnp.bfloat16)
    if n_pad != N:
        xb = jnp.pad(xb, ((0, 0), (0, 0), (0, n_pad - N)))

    grid = (B, n_pad // tile)

    def const_spec(shape):
        # whole-array block, same block at every grid point (loaded once)
        return pl.BlockSpec(shape, lambda b, i: tuple(0 for _ in shape))

    out = pl.pallas_call(
        _seg_kernel,
        out_shape=jax.ShapeDtypeStruct((B, n_pad, Cout), x.dtype),
        grid_spec=pltpu.PrefetchScalarGridSpec(
            num_scalar_prefetch=0,
            grid=grid,
            in_specs=[
                pl.BlockSpec((1, Cin, tile), lambda b, i: (b, 0, i)),  # x tile
                const_spec(w1f.shape), const_spec(t1f.shape),
                const_spec(w2f.shape), const_spec(t2f.shape),
                const_spec(w3f.shape), const_spec(t3f.shape),
            ],
            out_specs=pl.BlockSpec((1, tile, Cout), lambda b, i: (b, i, 0)),
        ),
        compiler_params=pltpu.CompilerParams(
            dimension_semantics=("parallel", "parallel"),
            vmem_limit_bytes=32 * 1024 * 1024,
        ),
    )(xb, w1f, t1f, w2f, t2f, w3f, t3f)

    return out[:, :N, :]


def init_params(key, input_size, output_size, of1=256, of2=256, eps=1e-5):
    """Deterministic synthetic parameters matching the module's __init__ shapes."""
    ks = jax.random.split(key, 18)

    def conv(kw, kb, cin, cout):
        # PyTorch Conv1d weight is (cout, cin, 1); stored transposed as (cin, cout).
        w = jax.random.normal(kw, (cin, cout), jnp.float32) * (1.0 / jnp.sqrt(cin))
        b = jax.random.normal(kb, (1, cout), jnp.float32) * 0.1
        return w, b

    def bn(kg, kb, km, kv, c):
        gamma = 1.0 + 0.1 * jax.random.normal(kg, (1, c), jnp.float32)
        beta = 0.1 * jax.random.normal(kb, (1, c), jnp.float32)
        mean = 0.1 * jax.random.normal(km, (1, c), jnp.float32)
        var = jnp.abs(jax.random.normal(kv, (1, c), jnp.float32)) + 0.5
        scale = gamma / jnp.sqrt(var + eps)       # folded BN (inference mode)
        shift = beta - mean * scale
        return scale, shift

    w1, b1 = conv(ks[0], ks[1], input_size, of1)
    w2, b2 = conv(ks[2], ks[3], of1, of2)
    w3, b3 = conv(ks[4], ks[5], of2, output_size)
    s1, t1 = bn(ks[6], ks[7], ks[8], ks[9], of1)
    s2, t2 = bn(ks[10], ks[11], ks[12], ks[13], of2)
    s3, t3 = bn(ks[14], ks[15], ks[16], ks[17], output_size)
    return (w1, b1, s1, t1, w2, b2, s2, t2, w3, b3, s3, t3)


def reference_forward(x, params, *, match_kernel_precision=True):
    """Pure-JAX reference of the eval-mode PyTorch forward.

    With match_kernel_precision=True it mirrors the kernel's numerics
    (bf16 matmul inputs, f32 accumulation, folded bias+BN).
    """
    (w1, b1, s1, t1, w2, b2, s2, t2, w3, b3, s3, t3) = params
    B, Cin, N = x.shape
    h = jnp.transpose(x, (0, 2, 1)).reshape(B * N, Cin)

    def layer(h, w, b, s, t):
        if match_kernel_precision:
            wf = (w * s).astype(jnp.bfloat16)
            y = jnp.dot(h.astype(jnp.bfloat16), wf,
                        preferred_element_type=jnp.float32) + (t + b * s)
        else:
            y = (h @ w + b) * s + t
        return jnp.maximum(y, 0.0)

    h = layer(h, w1, b1, s1, t1)
    h = layer(h, w2, b2, s2, t2)
    h = layer(h, w3, b3, s3, t3)
    return h.reshape(B, N, -1)


if __name__ == "__main__":
    # Small shapes consistent with the module: batch=2, input_size=64 channels,
    # N=640 points (ragged vs. the 256-wide tile), output_size=128 classes;
    # of1 = of2 = 256 are fixed by the module definition.
    B, Cin, N, Cout = 2, 64, 640, 128

    key = jax.random.PRNGKey(0)
    kx, kp = jax.random.split(key)
    x = jax.random.normal(kx, (B, Cin, N), jnp.float32)
    params = init_params(kp, Cin, Cout)

    # tn=256 keeps the test small while still exercising the multi-tile grid
    # (grid = (2, 3)) and the ragged-N padding path (640 -> 768).
    out = segmentation_forward(x, params, tn=256)
    out = jax.block_until_ready(out)

    ref = reference_forward(x, params, match_kernel_precision=True)
    assert out.shape == (B, N, Cout), out.shape
    max_err = float(jnp.max(jnp.abs(out - ref)))
    assert jnp.allclose(out, ref, atol=5e-2, rtol=5e-2), max_err

    print("KERNEL_OK")
</pallas_src>

<mosaic_0001>
module attributes {stable_mosaic.version = 11 : i64} {
  func.func @_seg_kernel(%arg0: i32, %arg1: i32, %arg2: memref<1x64x256xbf16, #tpu.memory_space<vmem>>, %arg3: memref<64x256xbf16, #tpu.memory_space<vmem>>, %arg4: memref<1x256xf32, #tpu.memory_space<vmem>>, %arg5: memref<256x256xbf16, #tpu.memory_space<vmem>>, %arg6: memref<1x256xf32, #tpu.memory_space<vmem>>, %arg7: memref<256x128xbf16, #tpu.memory_space<vmem>>, %arg8: memref<1x128xf32, #tpu.memory_space<vmem>>, %arg9: memref<1x256x128xf32, #tpu.memory_space<vmem>>) attributes {dimension_semantics = [#tpu.dimension_semantics<parallel>, #tpu.dimension_semantics<parallel>], iteration_bounds = array<i64: 2, 3>, scalar_prefetch = 0 : i64, scratch_operands = 0 : i64, tpu.core_type = #tpu.core_type<tc>, window_params = [{transform_indices = @transform_0, window_bounds = array<i64: 1, 64, 256>}, {pipeline_mode = #tpu.pipeline_mode<synchronous>, transform_indices = @transform_1, window_bounds = array<i64: 64, 256>}, {pipeline_mode = #tpu.pipeline_mode<synchronous>, transform_indices = @transform_2, window_bounds = array<i64: 1, 256>}, {pipeline_mode = #tpu.pipeline_mode<synchronous>, transform_indices = @transform_3, window_bounds = array<i64: 256, 256>}, {pipeline_mode = #tpu.pipeline_mode<synchronous>, transform_indices = @transform_4, window_bounds = array<i64: 1, 256>}, {pipeline_mode = #tpu.pipeline_mode<synchronous>, transform_indices = @transform_5, window_bounds = array<i64: 256, 128>}, {pipeline_mode = #tpu.pipeline_mode<synchronous>, transform_indices = @transform_6, window_bounds = array<i64: 1, 128>}, {transform_indices = @transform_7, window_bounds = array<i64: 1, 256, 128>}]} {
    %c0 = arith.constant 0 : index
    %c0_0 = arith.constant 0 : index
    %c0_1 = arith.constant 0 : index
    %0 = vector.load %arg2[%c0, %c0_0, %c0_1] : memref<1x64x256xbf16, #tpu.memory_space<vmem>>, vector<1x64x256xbf16>
    %1 = vector.shape_cast %0 : vector<1x64x256xbf16> to vector<64x256xbf16>
    %c0_2 = arith.constant 0 : index
    %c0_3 = arith.constant 0 : index
    %2 = vector.load %arg3[%c0_2, %c0_3] : memref<64x256xbf16, #tpu.memory_space<vmem>>, vector<64x256xbf16>
    %cst = arith.constant dense<0.000000e+00> : vector<256x256xf32>
    %3 = tpu.matmul %1, %2, %cst {dimension_numbers = #tpu.dot_dimension_numbers<[0], [0], [1], [1], [0, 1, 1, 1], [], []>} : vector<64x256xbf16>, vector<64x256xbf16>, vector<256x256xf32> -> vector<256x256xf32>
    %c0_4 = arith.constant 0 : index
    %c0_5 = arith.constant 0 : index
    %4 = vector.load %arg4[%c0_4, %c0_5] : memref<1x256xf32, #tpu.memory_space<vmem>>, vector<1x256xf32>
    %5 = vector.broadcast %4 : vector<1x256xf32> to vector<256x256xf32>
    %6 = arith.addf %3, %5 : vector<256x256xf32>
    %cst_6 = arith.constant 0.000000e+00 : f32
    %7 = vector.broadcast %cst_6 : f32 to vector<256x256xf32>
    %8 = arith.maximumf %6, %7 : vector<256x256xf32>
    %9 = arith.truncf %8 : vector<256x256xf32> to vector<256x256xbf16>
    %c0_7 = arith.constant 0 : index
    %c0_8 = arith.constant 0 : index
    %10 = vector.load %arg5[%c0_7, %c0_8] : memref<256x256xbf16, #tpu.memory_space<vmem>>, vector<256x256xbf16>
    %cst_9 = arith.constant dense<0.000000e+00> : vector<256x256xf32>
    %11 = tpu.matmul %9, %10, %cst_9 {dimension_numbers = #tpu.dot_dimension_numbers<[1], [0], [0], [1], [0, 0, 1, 1], [], []>} : vector<256x256xbf16>, vector<256x256xbf16>, vector<256x256xf32> -> vector<256x256xf32>
    %c0_10 = arith.constant 0 : index
    %c0_11 = arith.constant 0 : index
    %12 = vector.load %arg6[%c0_10, %c0_11] : memref<1x256xf32, #tpu.memory_space<vmem>>, vector<1x256xf32>
    %13 = vector.broadcast %12 : vector<1x256xf32> to vector<256x256xf32>
    %14 = arith.addf %11, %13 : vector<256x256xf32>
    %cst_12 = arith.constant 0.000000e+00 : f32
    %15 = vector.broadcast %cst_12 : f32 to vector<256x256xf32>
    %16 = arith.maximumf %14, %15 : vector<256x256xf32>
    %17 = arith.truncf %16 : vector<256x256xf32> to vector<256x256xbf16>
    %c0_13 = arith.constant 0 : index
    %c0_14 = arith.constant 0 : index
    %18 = vector.load %arg7[%c0_13, %c0_14] : memref<256x128xbf16, #tpu.memory_space<vmem>>, vector<256x128xbf16>
    %cst_15 = arith.constant dense<0.000000e+00> : vector<256x128xf32>
    %19 = tpu.matmul %17, %18, %cst_15 {dimension_numbers = #tpu.dot_dimension_numbers<[1], [0], [0], [1], [0, 0, 1, 1], [], []>} : vector<256x256xbf16>, vector<256x128xbf16>, vector<256x128xf32> -> vector<256x128xf32>
    %c0_16 = arith.constant 0 : index
    %c0_17 = arith.constant 0 : index
    %20 = vector.load %arg8[%c0_16, %c0_17] : memref<1x128xf32, #tpu.memory_space<vmem>>, vector<1x128xf32>
    %21 = vector.broadcast %20 : vector<1x128xf32> to vector<256x128xf32>
    %22 = arith.addf %19, %21 : vector<256x128xf32>
    %cst_18 = arith.constant 0.000000e+00 : f32
    %23 = vector.broadcast %cst_18 : f32 to vector<256x128xf32>
    %24 = arith.maximumf %22, %23 : vector<256x128xf32>
    %c0_19 = arith.constant 0 : index
    %c0_20 = arith.constant 0 : index
    %c0_21 = arith.constant 0 : index
    %25 = vector.load %arg9[%c0_19, %c0_20, %c0_21] : memref<1x256x128xf32, #tpu.memory_space<vmem>>, vector<1x256x128xf32>
    %26 = vector.shape_cast %25 : vector<1x256x128xf32> to vector<256x128xf32>
    %27 = vector.shape_cast %24 : vector<256x128xf32> to vector<1x256x128xf32>
    tpu.vector_store %arg9[%c0_19, %c0_20, %c0_21], %27 {strides = array<i32>} : memref<1x256x128xf32, #tpu.memory_space<vmem>>, vector<1x256x128xf32>,
    return
  }
  func.func @transform_0(%arg0: i32, %arg1: i32) -> (i32, i32, i32) {
    %c0_i32 = arith.constant 0 : i32
    %c0_i32_0 = arith.constant 0 : i32
    return %arg0, %c0_i32, %arg1 : i32, i32, i32
  }
  func.func @transform_1(%arg0: i32, %arg1: i32) -> (i32, i32) {
    %c0_i32 = arith.constant 0 : i32
    %c0_i32_0 = arith.constant 0 : i32
    %c0_i32_1 = arith.constant 0 : i32
    return %c0_i32, %c0_i32_0 : i32, i32
  }
  func.func @transform_2(%arg0: i32, %arg1: i32) -> (i32, i32) {
    %c0_i32 = arith.constant 0 : i32
    %c0_i32_0 = arith.constant 0 : i32
    %c0_i32_1 = arith.constant 0 : i32
    return %c0_i32, %c0_i32_0 : i32, i32
  }
  func.func @transform_3(%arg0: i32, %arg1: i32) -> (i32, i32) {
    %c0_i32 = arith.constant 0 : i32
    %c0_i32_0 = arith.constant 0 : i32
    %c0_i32_1 = arith.constant 0 : i32
    return %c0_i32, %c0_i32_0 : i32, i32
  }
  func.func @transform_4(%arg0: i32, %arg1: i32) -> (i32, i32) {
    %c0_i32 = arith.constant 0 : i32
    %c0_i32_0 = arith.constant 0 : i32
    %c0_i32_1 = arith.constant 0 : i32
    return %c0_i32, %c0_i32_0 : i32, i32
  }
  func.func @transform_5(%arg0: i32, %arg1: i32) -> (i32, i32) {
    %c0_i32 = arith.constant 0 : i32
    %c0_i32_0 = arith.constant 0 : i32
    %c0_i32_1 = arith.constant 0 : i32
    return %c0_i32, %c0_i32_0 : i32, i32
  }
  func.func @transform_6(%arg0: i32, %arg1: i32) -> (i32, i32) {
    %c0_i32 = arith.constant 0 : i32
    %c0_i32_0 = arith.constant 0 : i32
    %c0_i32_1 = arith.constant 0 : i32
    return %c0_i32, %c0_i32_0 : i32, i32
  }
  func.func @transform_7(%arg0: i32, %arg1: i32) -> (i32, i32, i32) {
    %c0_i32 = arith.constant 0 : i32
    %c0_i32_0 = arith.constant 0 : i32
    return %arg0, %arg1, %c0_i32 : i32, i32, i32
  }
}

</mosaic_0001>

<llo_original>
// kernel: segmentation_forward.1
$region0: #{segmentation_forward.1}
  #allocation0 [shape = 'u32[]', space=smem, size = 0x4, offset = 0x4, fixed_abs, tag = 'smem constant byte address 0x4 - core index']
  #allocation1 [shape = 'u32[144,128]{1,0:T(1,128)}', space=vmem, size = 0x12000, scoped, tag = 'internal scratch']
  %s0 = inlined_call_operand.vmem [shape: bf16[2,64,768], index: 0, kind: input, shape index: {}]
  %s1 = inlined_call_operand.vmem [shape: bf16[64,256], index: 1, kind: input, shape index: {}]
  %s2 = inlined_call_operand.vmem [shape: f32[1,256], index: 2, kind: input, shape index: {}]
  %s3 = inlined_call_operand.vmem [shape: bf16[256,256], index: 3, kind: input, shape index: {}]
  %s4 = inlined_call_operand.vmem [shape: f32[1,256], index: 4, kind: input, shape index: {}]
  %s5 = inlined_call_operand.vmem [shape: bf16[256,128], index: 5, kind: input, shape index: {}]
  %s6 = inlined_call_operand.vmem [shape: f32[1,128], index: 6, kind: input, shape index: {}]
  %s7 = inlined_call_operand.vmem [shape: f32[2,768,128], index: 7, kind: output, shape index: {}]
  %s8 = sld [smem:[#allocation0]]
  $region99: #{segmentation_forward.1} parent=0
    _
  %s10 = ssub.s32 1, %s8
  %s11 = scalar_select 0, %s10, %s8
  $region1: #{segmentation_forward.1} parent=0
    #allocation2 [shape = 'u8[65536]{0}', space=vmem, size = 0x10000, scoped, tag = 'input window, operand 0']
    loop: start=0, step=1, limit=8
    $region2: #{segmentation_forward.1} parent=1 // loop_pre_header
      _
    $region3: #{segmentation_forward.1} parent=1 // loop_header
      %s13 = sphi 0, %s17
      %p14 = scmp.ge.s32.totalorder %s13, 8
      %s20 = sphi 0, %s32
      %s21 = sphi 0, %s28
      %s22 = sphi 0, %s20
      %s23 = sphi 0, %s21
      %s24 = sphi 0, %s22
      %s25 = sphi 0, %s23
      %s37 = sphi 0, %s39
      %s40 = sphi 0, %s37
      %s41 = sphi 0, %s40
      %s57 = sphi 0, %s41
      %s61 = sphi 0, %s61
      %s63 = sphi 0, %s61
      %s64 = sphi 0, %s63
      %s78 = sphi 0, %s64
      %s82 = sphi 0, %s82
      %s84 = sphi 0, %s82
      %s85 = sphi 0, %s84
      %s99 = sphi 0, %s85
      %s103 = sphi 0, %s103
      %s105 = sphi 0, %s103
      %s106 = sphi 0, %s105
      %s120 = sphi 0, %s106
      %s124 = sphi 0, %s124
      %s126 = sphi 0, %s124
      %s127 = sphi 0, %s126
      %s141 = sphi 0, %s127
      %s145 = sphi 0, %s145
      %s147 = sphi 0, %s145
      %s148 = sphi 0, %s147
      %s162 = sphi 0, %s148
      %s166 = sphi 0, %s166
      %s168 = sphi 0, %s166
      %s169 = sphi 0, %s168
      %s183 = sphi 0, %s169
      %s191 = sphi 0, %s193
      %s194 = sphi 0, %s191
      %s195 = sphi 0, %s194
      %s211 = sphi 0, %s195
    $region4: #{segmentation_forward.1} parent=1 // loop_header_branch
      %16 = sbr.rel (%p14) target = $region8
    $region5: #{segmentation_forward.1} parent=1 // loop_body
      %s18 = ssub.s32 %s13, 1
      %s19 = ssub.s32 %s13, 2
      %s26 = sadd.s32 1, %s21
      %p27 = scmp.ge.s32.totalorder %s26, 3
      %s28 = scalar_select %p27, 0, %s26
      %s29 = sadd.s32 1, %s20
      %s30 = scalar_select %p27, %s29, %s20
      %p31 = scmp.ge.s32.totalorder %s30, 2
      %s32 = scalar_select %p31, 0, %s30
      %s33 = ssub.s32 %s20, %s32
      %s34 = ssub.s32 %s21, %s28
      %s35 = sor.u32 %s33, %s34
      %p36 = scmp.eq.s32.totalorder %s35, 0
      %s38 = sadd.s32 %s37, 1
      %s39 = scalar_select %p36, %s37, %s38
      %p42 = pneg %p36
      %p43 = scmp.eq.s32.totalorder %s13, 5
      %p44 = por %p42, %p43
      %p45 = scmp.ne.s32.totalorder %s37, %s40
      %p46 = scmp.eq.s32.totalorder %s13, 0
      %p47 = por %p45, %p46
      %p48 = scmp.ne.s32.totalorder %s37, %s40
      %p49 = scmp.eq.s32.totalorder %s18, 5
      %p50 = por %p48, %p49
      %p51 = scmp.ne.s32.totalorder %s40, %s41
      %p52 = scmp.eq.s32.totalorder %s18, 0
      %p53 = por %p51, %p52
      %p54 = scmp.ne.s32.totalorder %s40, %s41
      %p55 = scmp.eq.s32.totalorder %s19, 5
      %p56 = por %p54, %p55
      %p58 = scmp.ne.s32.totalorder %s41, %s57
      %p59 = scmp.eq.s32.totalorder %s19, 0
      %p60 = por %p58, %p59
      %s62 = sadd.s32 %s61, 1
      %p65 = scmp.eq.s32.totalorder %s13, 5
      %p66 = scmp.ne.s32.totalorder %s61, %s63
      %p67 = scmp.eq.s32.totalorder %s13, 0
      %p68 = por %p66, %p67
      %p69 = scmp.ne.s32.totalorder %s61, %s63
      %p70 = scmp.eq.s32.totalorder %s18, 5
      %p71 = por %p69, %p70
      %p72 = scmp.ne.s32.totalorder %s63, %s64
      %p73 = scmp.eq.s32.totalorder %s18, 0
      %p74 = por %p72, %p73
      %p75 = scmp.ne.s32.totalorder %s63, %s64
      %p76 = scmp.eq.s32.totalorder %s19, 5
      %p77 = por %p75, %p76
      %p79 = scmp.ne.s32.totalorder %s64, %s78
      %p80 = scmp.eq.s32.totalorder %s19, 0
      %p81 = por %p79, %p80
      %s83 = sadd.s32 %s82, 1
      %p86 = scmp.eq.s32.totalorder %s13, 5
      %p87 = scmp.ne.s32.totalorder %s82, %s84
      %p88 = scmp.eq.s32.totalorder %s13, 0
      %p89 = por %p87, %p88
      %p90 = scmp.ne.s32.totalorder %s82, %s84
      %p91 = scmp.eq.s32.totalorder %s18, 5
      %p92 = por %p90, %p91
      %p93 = scmp.ne.s32.totalorder %s84, %s85
      %p94 = scmp.eq.s32.totalorder %s18, 0
      %p95 = por %p93, %p94
      %p96 = scmp.ne.s32.totalorder %s84, %s85
      %p97 = scmp.eq.s32.totalorder %s19, 5
      %p98 = por %p96, %p97
      %p100 = scmp.ne.s32.totalorder %s85, %s99
      %p101 = scmp.eq.s32.totalorder %s19, 0
      %p102 = por %p100, %p101
      %s104 = sadd.s32 %s103, 1
      %p107 = scmp.eq.s32.totalorder %s13, 5
      %p108 = scmp.ne.s32.totalorder %s103, %s105
      %p109 = scmp.eq.s32.totalorder %s13, 0
      %p110 = por %p108, %p109
      %p111 = scmp.ne.s32.totalorder %s103, %s105
      %p112 = scmp.eq.s32.totalorder %s18, 5
      %p113 = por %p111, %p112
      %p114 = scmp.ne.s32.totalorder %s105, %s106
      %p115 = scmp.eq.s32.totalorder %s18, 0
      %p116 = por %p114, %p115
      %p117 = scmp.ne.s32.totalorder %s105, %s106
      %p118 = scmp.eq.s32.totalorder %s19, 5
      %p119 = por %p117, %p118
      %p121 = scmp.ne.s32.totalorder %s106, %s120
      %p122 = scmp.eq.s32.totalorder %s19, 0
      %p123 = por %p121, %p122
      %s125 = sadd.s32 %s124, 1
      %p128 = scmp.eq.s32.totalorder %s13, 5
      %p129 = scmp.ne.s32.totalorder %s124, %s126
      %p130 = scmp.eq.s32.totalorder %s13, 0
      %p131 = por %p129, %p130
      %p132 = scmp.ne.s32.totalorder %s124, %s126
      %p133 = scmp.eq.s32.totalorder %s18, 5
      %p134 = por %p132, %p133
      %p135 = scmp.ne.s32.totalorder %s126, %s127
      %p136 = scmp.eq.s32.totalorder %s18, 0
      %p137 = por %p135, %p136
      %p138 = scmp.ne.s32.totalorder %s126, %s127
      %p139 = scmp.eq.s32.totalorder %s19, 5
      %p140 = por %p138, %p139
      %p142 = scmp.ne.s32.totalorder %s127, %s141
      %p143 = scmp.eq.s32.totalorder %s19, 0
      %p144 = por %p142, %p143
      %s146 = sadd.s32 %s145, 1
      %p149 = scmp.eq.s32.totalorder %s13, 5
      %p150 = scmp.ne.s32.totalorder %s145, %s147
      %p151 = scmp.eq.s32.totalorder %s13, 0
      %p152 = por %p150, %p151
      %p153 = scmp.ne.s32.totalorder %s145, %s147
      %p154 = scmp.eq.s32.totalorder %s18, 5
      %p155 = por %p153, %p154
      %p156 = scmp.ne.s32.totalorder %s147, %s148
      %p157 = scmp.eq.s32.totalorder %s18, 0
      %p158 = por %p156, %p157
      %p159 = scmp.ne.s32.totalorder %s147, %s148
      %p160 = scmp.eq.s32.totalorder %s19, 5
      %p161 = por %p159, %p160
      %p163 = scmp.ne.s32.totalorder %s148, %s162
      %p164 = scmp.eq.s32.totalorder %s19, 0
      %p165 = por %p163, %p164
      %s167 = sadd.s32 %s166, 1
      %p170 = scmp.eq.s32.totalorder %s13, 5
      %p171 = scmp.ne.s32.totalorder %s166, %s168
      %p172 = scmp.eq.s32.totalorder %s13, 0
      %p173 = por %p171, %p172
      %p174 = scmp.ne.s32.totalorder %s166, %s168
      %p175 = scmp.eq.s32.totalorder %s18, 5
      %p176 = por %p174, %p175
      %p177 = scmp.ne.s32.totalorder %s168, %s169
      %p178 = scmp.eq.s32.totalorder %s18, 0
      %p179 = por %p177, %p178
      %p180 = scmp.ne.s32.totalorder %s168, %s169
      %p181 = scmp.eq.s32.totalorder %s19, 5
      %p182 = por %p180, %p181
      %p184 = scmp.ne.s32.totalorder %s169, %s183
      %p185 = scmp.eq.s32.totalorder %s19, 0
      %p186 = por %p184, %p185
      %s187 = ssub.s32 %s20, %s32
      %s188 = ssub.s32 %s21, %s28
      %s189 = sor.u32 %s187, %s188
      %p190 = scmp.eq.s32.totalorder %s189, 0
      %s192 = sadd.s32 %s191, 1
      %s193 = scalar_select %p190, %s191, %s192
      %p196 = pneg %p190
      %p197 = scmp.eq.s32.totalorder %s13, 5
      %p198 = por %p196, %p197
      %p199 = scmp.ne.s32.totalorder %s191, %s194
      %p200 = scmp.eq.s32.totalorder %s13, 0
      %p201 = por %p199, %p200
      %p202 = scmp.ne.s32.totalorder %s191, %s194
      %p203 = scmp.eq.s32.totalorder %s18, 5
      %p204 = por %p202, %p203
      %p205 = scmp.ne.s32.totalorder %s194, %s195
      %p206 = scmp.eq.s32.totalorder %s18, 0
      %p207 = por %p205, %p206
      %p208 = scmp.ne.s32.totalorder %s194, %s195
      %p209 = scmp.eq.s32.totalorder %s19, 5
      %p210 = por %p208, %p209
      %p212 = scmp.ne.s32.totalorder %s195, %s211
      %p213 = scmp.eq.s32.totalorder %s19, 0
      %p214 = por %p212, %p213
      %p215 = scmp.le.s32.totalorder 1, %s13
      %p216 = scmp.lt.s32.totalorder %s13, 7
      %p217 = pnand %p215, %p216
      %p218 = pneg %p217
      // Predicated region
      $region9: #{segmentation_forward.1} parent=5 // pred_check
        _
      $region10: #{segmentation_forward.1} parent=5 // pred_check_branch
        %220 = sbr.rel (%p217) target = $region12
      $region11: #{segmentation_forward.1} parent=5 // pred_region
        %s221 = ssub.s32 %s13, 1
        // Predicated region
        $region13: #{segmentation_forward.1} parent=11 // pred_check
          %p222 = pneg %p74
        $region14: #{segmentation_forward.1} parent=11 // pred_check_branch
          %224 = sbr.rel (%p222) target = $region16
        $region15: #{segmentation_forward.1} parent=11 // pred_region
          _
        $region16: #{segmentation_forward.1} parent=11 // pred_fallthru
          _
        // Predicated region
        $region17: #{segmentation_forward.1} parent=11 // pred_check
          %p225 = pneg %p95
        $region18: #{segmentation_forward.1} parent=11 // pred_check_branch
          %227 = sbr.rel (%p225) target = $region20
        $region19: #{segmentation_forward.1} parent=11 // pred_region
          _
        $region20: #{segmentation_forward.1} parent=11 // pred_fallthru
          _
        // Predicated region
        $region21: #{segmentation_forward.1} parent=11 // pred_check
          %p228 = pneg %p116
        $region22: #{segmentation_forward.1} parent=11 // pred_check_branch
          %230 = sbr.rel (%p228) target = $region24
        $region23: #{segmentation_forward.1} parent=11 // pred_region
          _
        $region24: #{segmentation_forward.1} parent=11 // pred_fallthru
          _
        // Predicated region
        $region25: #{segmentation_forward.1} parent=11 // pred_check
          %p231 = pneg %p137
        $region26: #{segmentation_forward.1} parent=11 // pred_check_branch
          %233 = sbr.rel (%p231) target = $region28
        $region27: #{segmentation_forward.1} parent=11 // pred_region
          _
        $region28: #{segmentation_forward.1} parent=11 // pred_fallthru
          _
        // Predicated region
        $region29: #{segmentation_forward.1} parent=11 // pred_check
          %p234 = pneg %p158
        $region30: #{segmentation_forward.1} parent=11 // pred_check_branch
          %236 = sbr.rel (%p234) target = $region32
        $region31: #{segmentation_forward.1} parent=11 // pred_region
          _
        $region32: #{segmentation_forward.1} parent=11 // pred_fallthru
          _
        // Predicated region
        $region33: #{segmentation_forward.1} parent=11 // pred_check
          %p237 = pneg %p179
        $region34: #{segmentation_forward.1} parent=11 // pred_check_branch
          %239 = sbr.rel (%p237) target = $region36
        $region35: #{segmentation_forward.1} parent=11 // pred_region
          _
        $region36: #{segmentation_forward.1} parent=11 // pred_fallthru
          _
      $region12: #{segmentation_forward.1} parent=5 // pred_fallthru
        _
      %p240 = scmp.lt.s32.totalorder %s13, 6
      // Predicated region
      $region37: #{segmentation_forward.1} parent=5 // pred_check
        %p241 = pneg %p240
      $region38: #{segmentation_forward.1} parent=5 // pred_check_branch
        %243 = sbr.rel (%p241) target = $region40
      $region39: #{segmentation_forward.1} parent=5 // pred_region
        // Predicated region
        $region41: #{segmentation_forward.1} parent=39 // pred_check
          %p244 = pneg %p47
        $region42: #{segmentation_forward.1} parent=39 // pred_check_branch
          %246 = sbr.rel (%p244) target = $region44
        $region43: #{segmentation_forward.1} parent=39 // pred_region
          %s247 = sand.u32 %s37, 1
          %s248 = sand.u32 %s37, 1
          %s249 = smul.addr %s248, 64
          %s250 = scalar_lea.vmem [#allocation2], %s249
          %s251 = smul.u32 2, %s21
          %s252 = smul.addr %s20, 48
          %s253 = sadd.s32 %s251, %s252
          %s254 = smul.addr %s253, 4
          %s255 = scalar_lea.vmem %s0, %s254
          // Predicated region
          $region45: #{segmentation_forward.1} parent=43 // pred_check
            _
          $region46: #{segmentation_forward.1} parent=43 // pred_check_branch
            %257 = sbr.rel (0) target = $region48
          $region47: #{segmentation_forward.1} parent=43 // pred_region
            // Predicated region
            $region49: #{segmentation_forward.1} parent=47 // pred_check
              _
            $region50: #{segmentation_forward.1} parent=47 // pred_check_branch
              %259 = sbr.rel (0) target = $region52
            $region51: #{segmentation_forward.1} parent=47 // pred_region
              // Predicated region
              $region64: #{segmentation_forward.1} parent=51 // pred_check
                _
              $region65: #{segmentation_forward.1} parent=51 // pred_check_branch
                %288 = sbr.rel (0) target = $region67
              $region66: #{segmentation_forward.1} parent=51 // pred_region
                loop: start=0, step=1, limit=1
                $region68: #{segmentation_forward.1} parent=66 // loop_pre_header
                  _
                $region69: #{segmentation_forward.1} parent=66 // loop_header
                  %s290 = sphi 0, %s294
                  %p291 = scmp.ge.s32.totalorder %s290, 1
                  %s295 = sphi %s255, %s255
                  %s296 = sphi %s250, %s250
                $region70: #{segmentation_forward.1} parent=66 // loop_header_branch
                  %293 = sbr.rel (%p291) target = $region74
                $region71: #{segmentation_forward.1} parent=66 // loop_body
                  %v297 = vld [vmem:[%s295] sm:$0xff]
                  %298 = vst [vmem:[%s296] sm:$0xff] %v297
                  %v299 = vld [vmem:[%s295 + $0x18] sm:$0xff]
                  %300 = vst [vmem:[%s296 + $0x8] sm:$0xff] %v299
                  %v301 = vld [vmem:[%s295 + $0x30] sm:$0xff]
                  %302 = vst [vmem:[%s296 + $0x10] sm:$0xff] %v301
                  %v303 = vld [vmem:[%s295 + $0x48] sm:$0xff]
                  %304 = vst [vmem:[%s296 + $0x18] sm:$0xff] %v303
                  %v305 = vld [vmem:[%s295 + $0x60] sm:$0xff]
                  %306 = vst [vmem:[%s296 + $0x20] sm:$0xff] %v305
                  %v307 = vld [vmem:[%s295 + $0x78] sm:$0xff]
                  %308 = vst [vmem:[%s296 + $0x28] sm:$0xff] %v307
                  %v309 = vld [vmem:[%s295 + $0x90] sm:$0xff]
                  %310 = vst [vmem:[%s296 + $0x30] sm:$0xff] %v309
                  %v311 = vld [vmem:[%s295 + $0xa8] sm:$0xff]
                  %312 = vst [vmem:[%s296 + $0x38] sm:$0xff] %v311
                $region72: #{segmentation_forward.1} parent=66 // loop_footer
                  %s294 = sadd.s32 1, %s290
                $region73: #{segmentation_forward.1} parent=66 // loop_footer_branch
                  %289 = sbr.rel target = $region69
                $region74: #{segmentation_forward.1} parent=66 // loop_exit
                  _
              $region67: #{segmentation_forward.1} parent=51 // pred_fallthru
                _
              // Predicated region
              $region75: #{segmentation_forward.1} parent=51 // pred_check
                _
              $region76: #{segmentation_forward.1} parent=51 // pred_check_branch
                %314 = sbr.rel target = $region78
              $region77: #{segmentation_forward.1} parent=51 // pred_region
                _
              $region78: #{segmentation_forward.1} parent=51 // pred_fallthru
                _
            $region52: #{segmentation_forward.1} parent=47 // pred_fallthru
              _
            // Predicated region
            $region53: #{segmentation_forward.1} parent=47 // pred_check
              _
            $region54: #{segmentation_forward.1} parent=47 // pred_check_branch
              %261 = sbr.rel target = $region56
            $region55: #{segmentation_forward.1} parent=47 // pred_region
              loop: start=0, step=1, limit=1
              $region57: #{segmentation_forward.1} parent=55 // loop_pre_header
                _
              $region58: #{segmentation_forward.1} parent=55 // loop_header
                %s264 = sphi 0, %s268
                %p265 = scmp.ge.s32.totalorder %s264, 1
                %s269 = sphi %s255, %s255
                %s270 = sphi %s250, %s250
              $region59: #{segmentation_forward.1} parent=55 // loop_header_branch
                %267 = sbr.rel (%p265) target = $region63
              $region60: #{segmentation_forward.1} parent=55 // loop_body
                %v271 = vld [vmem:[%s269] sm:$0xff]
                %272 = vst [vmem:[%s270] sm:$0xff] %v271
                %v273 = vld [vmem:[%s269 + $0x18] sm:$0xff]
                %274 = vst [vmem:[%s270 + $0x8] sm:$0xff] %v273
                %v275 = vld [vmem:[%s269 + $0x30] sm:$0xff]
                %276 = vst [vmem:[%s270 + $0x10] sm:$0xff] %v275
                %v277 = vld [vmem:[%s269 + $0x48] sm:$0xff]
                %278 = vst [vmem:[%s270 + $0x18] sm:$0xff] %v277
                %v279 = vld [vmem:[%s269 + $0x60] sm:$0xff]
                %280 = vst [vmem:[%s270 + $0x20] sm:$0xff] %v279
                %v281 = vld [vmem:[%s269 + $0x78] sm:$0xff]
                %282 = vst [vmem:[%s270 + $0x28] sm:$0xff] %v281
                %v283 = vld [vmem:[%s269 + $0x90] sm:$0xff]
                %284 = vst [vmem:[%s270 + $0x30] sm:$0xff] %v283
                %v285 = vld [vmem:[%s269 + $0xa8] sm:$0xff]
                %286 = vst [vmem:[%s270 + $0x38] sm:$0xff] %v285
              $region61: #{segmentation_forward.1} parent=55 // loop_footer
                %s268 = sadd.s32 1, %s264
              $region62: #{segmentation_forward.1} parent=55 // loop_footer_branch
                %263 = sbr.rel target = $region58
              $region63: #{segmentation_forward.1} parent=55 // loop_exit
                _
            $region56: #{segmentation_forward.1} parent=47 // pred_fallthru
              _
          $region48: #{segmentation_forward.1} parent=43 // pred_fallthru
            _
          %315 = vnop
        $region44: #{segmentation_forward.1} parent=39 // pred_fallthru
          _
      $region40: #{segmentation_forward.1} parent=5 // pred_fallthru
        _
      %p316 = scmp.le.s32.totalorder 1, %s13
      %p317 = scmp.lt.s32.totalorder %s13, 7
      %p318 = pnand %p316, %p317
      %p319 = pneg %p318
      // Predicated region
      $region79: #{segmentation_forward.1} parent=5 // pred_check
        _
      $region80: #{segmentation_forward.1} parent=5 // pred_check_branch
        %321 = sbr.rel (%p318) target = $region82
      $region81: #{segmentation_forward.1} parent=5 // pred_region
        %s322 = ssub.s32 %s13, 1
        %s323 = sand.u32 %s40, 1
        %s324 = sand.u32 %s40, 1
        %s325 = smul.addr %s324, 64
        %s326 = scalar_lea.vmem [#allocation2], %s325
        // Predicated region
        $region83: #{segmentation_forward.1} parent=81 // pred_check
          %p327 = pneg %p53
        $region84: #{segmentation_forward.1} parent=81 // pred_check_branch
          %329 = sbr.rel (%p327) target = $region86
        $region85: #{segmentation_forward.1} parent=81 // pred_region
          _
        $region86: #{segmentation_forward.1} parent=81 // pred_fallthru
          _
        %s330 = sand.u32 %s40, 1
        %s331 = sand.u32 %s40, 1
        %s332 = smul.addr %s331, 64
        %s333 = scalar_lea.vmem [#allocation2], %s332
        %p334 = pneg %p53
        %p335 = pneg %p50
        %p336 = pneg %p74
        %p337 = pneg %p71
        %p338 = pneg %p95
        %p339 = pneg %p92
        %p340 = pneg %p116
        %p341 = pneg %p113
        %p342 = pneg %p137
        %p343 = pneg %p134
        %p344 = pneg %p158
        %p345 = pneg %p155
        %p346 = pneg %p179
        %p347 = pneg %p176
        %p348 = pneg %p207
        %p349 = pneg %p204
        %s350 = smul.u32 32, %s23
        %p351 = scmp.lt.s32.totalorder %s22, 1
        %s352 = scalar_select %p351, %s22, 1
        %p353 = scmp.lt.s32.totalorder %s350, 95
        %s354 = scalar_select %p353, %s350, 95
        %s355 = smul.addr %s352, 96
        %s356 = sadd.s32 %s354, %s355
        %s357 = smul.addr %s356, 8
        %s358 = scalar_lea.vmem %s7, %s357
        %s359 = smul.u32 2, %s23
        %s360 = smul.u32 32, %s23
        %p361 = scmp.lt.s32.totalorder %s22, 1
        %s362 = scalar_select %p361, %s22, 1
        %p363 = scmp.lt.s32.totalorder %s360, 95
        %s364 = scalar_select %p363, %s360, 95
        %s365 = smul.addr %s362, 96
        %s366 = sadd.s32 %s364, %s365
        %s367 = smul.addr %s366, 8
        %s368 = scalar_lea.vmem %s7, %s367
        %s369 = smul.u32 32, %s23
        %v371 = vld [vmem:[%s326] sm:$0xff]
        %v372 = vld [vmem:[%s326 + $0x8] sm:$0xff]
        %v373 = vld [vmem:[%s326 + $0x10] sm:$0xff]
        %v374 = vld [vmem:[%s326 + $0x18] sm:$0xff]
        %v375 = vld [vmem:[%s326 + $0x20] sm:$0xff]
        %v376 = vld [vmem:[%s326 + $0x28] sm:$0xff]
        %v377 = vld [vmem:[%s326 + $0x30] sm:$0xff]
        %v378 = vld [vmem:[%s326 + $0x38] sm:$0xff]
        %v379 = vld [vmem:[%s1] sm:$0xff]
        %v380 = vld [vmem:[%s1 + $0x8] sm:$0xff]
        %v381 = vld [vmem:[%s1 + $0x10] sm:$0xff]
        %v382 = vld [vmem:[%s1 + $0x18] sm:$0xff]
        %v383 = vld [vmem:[%s1 + $0x20] sm:$0xff]
        %v384 = vld [vmem:[%s1 + $0x28] sm:$0xff]
        %v385 = vld [vmem:[%s1 + $0x30] sm:$0xff]
        %v386 = vld [vmem:[%s1 + $0x38] sm:$0xff]
        %v387 = vld [vmem:[%s2] sm:$0x3]
        %v389 = vlaneseq
        %v390 = vshrl.u32 %v389, 7
        %v391 = vsub.s32 0, %v390
        %v392 = vrot.slane %v387, %v391
        %v393 = vlaneseq
        %v394 = vshrl.u32 %v393, 7
        %v395 = vsub.s32 1, %v394
        %v396 = vrot.slane %v387, %v395
        %v407 = vunpack.c.l.b16 %v371
        %v408 = vunpack.c.h.b16 %v371
        %v409 = vunpack.c.l.b16 %v372
        %v410 = vunpack.c.h.b16 %v372
        %v411 = vunpack.c.l.b16 %v373
        %v412 = vunpack.c.h.b16 %v373
        %v413 = vunpack.c.l.b16 %v374
        %v414 = vunpack.c.h.b16 %v374
        %v415 = vunpack.c.l.b16 %v375
        %v416 = vunpack.c.h.b16 %v375
        %v417 = vunpack.c.l.b16 %v376
        %v418 = vunpack.c.h.b16 %v376
        %v419 = vunpack.c.l.b16 %v377
        %v420 = vunpack.c.h.b16 %v377
        %v421 = vunpack.c.l.b16 %v378
        %v422 = vunpack.c.h.b16 %v378
        %v423 = vpack.c.b16 %v409, %v407
        %v424 = vpack.c.b16 %v410, %v408
        %v425 = vpack.c.b16 %v413, %v411
        %v426 = vpack.c.b16 %v414, %v412
        %v427 = vpack.c.b16 %v417, %v415
        %v428 = vpack.c.b16 %v418, %v416
        %v429 = vpack.c.b16 %v421, %v419
        %v430 = vpack.c.b16 %v422, %v420
        %439 = vxpose.xlu0.c.b16.start [1/8] %v423, 128
        %440 = vxpose.xlu0.c.b16.cont [2/8] %v425, 128
        %441 = vxpose.xlu0.c.b16.cont [3/8] %v427, 128
        %442 = vxpose.xlu0.c.b16.cont [4/8] %v429, 128
        %443 = vxpose.xlu0.c.b16.cont [5/8] 0, 128
        %444 = vxpose.xlu0.c.b16.cont [6/8] 0, 128
        %445 = vxpose.xlu0.c.b16.cont [7/8] 0, 128
        %446 = vxpose.xlu0.c.b16.end [8/8] 0, 128
        %v447 = vpop.trf.xlu0
        %v448 = vpop.trf.xlu0
        %v449 = vpop.trf.xlu0
        %v450 = vpop.trf.xlu0
        %v451 = vpop.trf.xlu0
        %v452 = vpop.trf.xlu0
        %v453 = vpop.trf.xlu0
        %v454 = vpop.trf.xlu0
        %455 = vxpose.xlu0.c.b16.start [1/8] %v424, 128
        %456 = vxpose.xlu0.c.b16.cont [2/8] %v426, 128
        %457 = vxpose.xlu0.c.b16.cont [3/8] %v428, 128
        %458 = vxpose.xlu0.c.b16.cont [4/8] %v430, 128
        %459 = vxpose.xlu0.c.b16.cont [5/8] 0, 128
        %460 = vxpose.xlu0.c.b16.cont [6/8] 0, 128
        %461 = vxpose.xlu0.c.b16.cont [7/8] 0, 128
        %462 = vxpose.xlu0.c.b16.end [8/8] 0, 128
        %v463 = vpop.trf.xlu0
        %v464 = vpop.trf.xlu0
        %v465 = vpop.trf.xlu0
        %v466 = vpop.trf.xlu0
        %v467 = vpop.trf.xlu0
        %v468 = vpop.trf.xlu0
        %v469 = vpop.trf.xlu0
        %v470 = vpop.trf.xlu0
        %v479 = vunpack.c.l.b16 %v379
        %v480 = vunpack.c.h.b16 %v379
        %v481 = vunpack.c.l.b16 %v380
        %v482 = vunpack.c.h.b16 %v380
        %v483 = vunpack.c.l.b16 %v381
        %v484 = vunpack.c.h.b16 %v381
        %v485 = vunpack.c.l.b16 %v382
        %v486 = vunpack.c.h.b16 %v382
        %v487 = vunpack.c.l.b16 %v383
        %v488 = vunpack.c.h.b16 %v383
        %v489 = vunpack.c.l.b16 %v384
        %v490 = vunpack.c.h.b16 %v384
        %v491 = vunpack.c.l.b16 %v385
        %v492 = vunpack.c.h.b16 %v385
        %v493 = vunpack.c.l.b16 %v386
        %v494 = vunpack.c.h.b16 %v386
        %v495 = vpack.c.b16 %v481, %v479
        %v496 = vpack.c.b16 %v482, %v480
        %v497 = vpack.c.b16 %v485, %v483
        %v498 = vpack.c.b16 %v486, %v484
        %v499 = vpack.c.b16 %v489, %v487
        %v500 = vpack.c.b16 %v490, %v488
        %v501 = vpack.c.b16 %v493, %v491
        %v502 = vpack.c.b16 %v494, %v492
        %vm511 = vcmask 523264
        %v513 = vsel %vm511, %v447, 0
        %v516 = vsel %vm511, %v448, 0
        %v519 = vsel %vm511, %v449, 0
        %v522 = vsel %vm511, %v450, 0
        %v525 = vsel %vm511, %v451, 0
        %v528 = vsel %vm511, %v452, 0
        %v531 = vsel %vm511, %v453, 0
        %v534 = vsel %vm511, %v454, 0
        %v537 = vsel %vm511, %v463, 0
        %v540 = vsel %vm511, %v464, 0
        %v543 = vsel %vm511, %v465, 0
        %v546 = vsel %vm511, %v466, 0
        %v549 = vsel %vm511, %v467, 0
        %v552 = vsel %vm511, %v468, 0
        %v555 = vsel %vm511, %v469, 0
        %v558 = vsel %vm511, %v470, 0
        %560 = vmatprep.subr.bf16.mxu0 %v496
        %561 = vmatpush1.bf16.msra.mxu0 %v495
        %562 = vmatprep.subr.bf16.mxu0 %v498
        %563 = vmatpush1.bf16.msra.mxu0 %v497
        %564 = vmatprep.subr.bf16.mxu0 %v500
        %565 = vmatpush1.bf16.msra.mxu0 %v499
        %566 = vmatprep.subr.bf16.mxu0 %v502
        %567 = vmatpush1.bf16.msra.mxu0 %v501
        %568 = vmatprep.subr.bf16.mxu0 0
        %569 = vmatpush1.bf16.msra.mxu0 0
        %570 = vmatprep.subr.bf16.mxu0 0
        %571 = vmatpush1.bf16.msra.mxu0 0
        %572 = vmatprep.subr.bf16.mxu0 0
        %573 = vmatpush1.bf16.msra.mxu0 0
        %574 = vmatprep.subr.bf16.mxu0 0
        %575 = vmatpush1.bf16.msra.mxu0 0
        %576 = vmatprep.subr.bf16.mxu0 0
        %577 = vmatpush1.bf16.msra.mxu0 0
        %578 = vmatprep.subr.bf16.mxu0 0
        %579 = vmatpush1.bf16.msra.mxu0 0
        %580 = vmatprep.subr.bf16.mxu0 0
        %581 = vmatpush1.bf16.msra.mxu0 0
        %582 = vmatprep.subr.bf16.mxu0 0
        %583 = vmatpush1.bf16.msra.mxu0 0
        %584 = vmatprep.subr.bf16.mxu0 0
        %585 = vmatpush1.bf16.msra.mxu0 0
        %586 = vmatprep.subr.bf16.mxu0 0
        %587 = vmatpush1.bf16.msra.mxu0 0
        %588 = vmatprep.subr.bf16.mxu0 0
        %589 = vmatpush1.bf16.msra.mxu0 0
        %590 = vmatprep.subr.bf16.mxu0 0
        %591 = vmatpush1.bf16.msra.mxu0 0
        %592 = vmatprep.mubr.bf16.mxu0 0
        %593 = vmatmul.mubr.bf16.gmra.mrb[0].mxu0 %v513
        %v594 = vpop.f32.mrb[0].mxu0
        %v595 = vadd.f32 %v392, %v594
        %v596 = vpop.f32.mrb[0].mxu0
        %v597 = vadd.f32 %v396, %v596
        %v598 = vpop.f32.mrb[0].mxu0
        %v599 = vadd.f32 %v392, %v598
        %v600 = vpop.f32.mrb[0].mxu0
        %v601 = vadd.f32 %v396, %v600
        %602 = vmatprep.mubr.bf16.mxu0 0
        %603 = vmatmul.mubr.bf16.gmra.mrb[0].mxu0 %v516
        %v604 = vpop.f32.mrb[0].mxu0
        %v605 = vadd.f32 %v392, %v604
        %v606 = vpop.f32.mrb[0].mxu0
        %v607 = vadd.f32 %v396, %v606
        %v608 = vpop.f32.mrb[0].mxu0
        %v609 = vadd.f32 %v392, %v608
        %v610 = vpop.f32.mrb[0].mxu0
        %v611 = vadd.f32 %v396, %v610
        %612 = vmatprep.mubr.bf16.mxu0 0
        %613 = vmatmul.mubr.bf16.gmra.mrb[0].mxu0 %v519
        %v614 = vpop.f32.mrb[0].mxu0
        %v615 = vadd.f32 %v392, %v614
        %v616 = vpop.f32.mrb[0].mxu0
        %v617 = vadd.f32 %v396, %v616
        %v618 = vpop.f32.mrb[0].mxu0
        %v619 = vadd.f32 %v392, %v618
        %v620 = vpop.f32.mrb[0].mxu0
        %v621 = vadd.f32 %v396, %v620
        %622 = vmatprep.mubr.bf16.mxu0 0
        %623 = vmatmul.mubr.bf16.gmra.mrb[0].mxu0 %v522
        %v624 = vpop.f32.mrb[0].mxu0
        %v625 = vadd.f32 %v392, %v624
        %v626 = vpop.f32.mrb[0].mxu0
        %v627 = vadd.f32 %v396, %v626
        %v628 = vpop.f32.mrb[0].mxu0
        %v629 = vadd.f32 %v392, %v628
        %v630 = vpop.f32.mrb[0].mxu0
        %v631 = vadd.f32 %v396, %v630
        %632 = vmatprep.mubr.bf16.mxu0 0
        %633 = vmatmul.mubr.bf16.gmra.mrb[0].mxu0 %v525
        %v634 = vpop.f32.mrb[0].mxu0
        %v635 = vadd.f32 %v392, %v634
        %v636 = vpop.f32.mrb[0].mxu0
        %v637 = vadd.f32 %v396, %v636
        %v638 = vpop.f32.mrb[0].mxu0
        %v639 = vadd.f32 %v392, %v638
        %v640 = vpop.f32.mrb[0].mxu0
        %v641 = vadd.f32 %v396, %v640
        %642 = vmatprep.mubr.bf16.mxu0 0
        %643 = vmatmul.mubr.bf16.gmra.mrb[0].mxu0 %v528
        %v644 = vpop.f32.mrb[0].mxu0
        %v645 = vadd.f32 %v392, %v644
        %v646 = vpop.f32.mrb[0].mxu0
        %v647 = vadd.f32 %v396, %v646
        %v648 = vpop.f32.mrb[0].mxu0
        %v649 = vadd.f32 %v392, %v648
        %v650 = vpop.f32.mrb[0].mxu0
        %v651 = vadd.f32 %v396, %v650
        %652 = vmatprep.mubr.bf16.mxu0 0
        %653 = vmatmul.mubr.bf16.gmra.mrb[0].mxu0 %v531
        %v654 = vpop.f32.mrb[0].mxu0
        %v655 = vadd.f32 %v392, %v654
        %v656 = vpop.f32.mrb[0].mxu0
        %v657 = vadd.f32 %v396, %v656
        %v658 = vpop.f32.mrb[0].mxu0
        %v659 = vadd.f32 %v392, %v658
        %v660 = vpop.f32.mrb[0].mxu0
        %v661 = vadd.f32 %v396, %v660
        %662 = vmatprep.mubr.bf16.mxu0 0
        %663 = vmatmul.mubr.bf16.gmra.mrb[0].mxu0 %v534
        %v664 = vpop.f32.mrb[0].mxu0
        %v665 = vadd.f32 %v392, %v664
        %v666 = vpop.f32.mrb[0].mxu0
        %v667 = vadd.f32 %v396, %v666
        %v668 = vpop.f32.mrb[0].mxu0
        %v669 = vadd.f32 %v392, %v668
        %v670 = vpop.f32.mrb[0].mxu0
        %v671 = vadd.f32 %v396, %v670
        %672 = vmatprep.mubr.bf16.mxu0 0
        %673 = vmatmul.mubr.bf16.gmra.mrb[0].mxu0 %v537
        %v674 = vpop.f32.mrb[0].mxu0
        %v675 = vadd.f32 %v392, %v674
        %v676 = vpop.f32.mrb[0].mxu0
        %v677 = vadd.f32 %v396, %v676
        %v678 = vpop.f32.mrb[0].mxu0
        %v679 = vadd.f32 %v392, %v678
        %v680 = vpop.f32.mrb[0].mxu0
        %v681 = vadd.f32 %v396, %v680
        %682 = vmatprep.mubr.bf16.mxu0 0
        %683 = vmatmul.mubr.bf16.gmra.mrb[0].mxu0 %v540
        %v684 = vpop.f32.mrb[0].mxu0
        %v685 = vadd.f32 %v392, %v684
        %v686 = vpop.f32.mrb[0].mxu0
        %v687 = vadd.f32 %v396, %v686
        %v688 = vpop.f32.mrb[0].mxu0
        %v689 = vadd.f32 %v392, %v688
        %v690 = vpop.f32.mrb[0].mxu0
        %v691 = vadd.f32 %v396, %v690
        %692 = vmatprep.mubr.bf16.mxu0 0
        %693 = vmatmul.mubr.bf16.gmra.mrb[0].mxu0 %v543
        %v694 = vpop.f32.mrb[0].mxu0
        %v695 = vadd.f32 %v392, %v694
        %v696 = vpop.f32.mrb[0].mxu0
        %v697 = vadd.f32 %v396, %v696
        %v698 = vpop.f32.mrb[0].mxu0
        %v699 = vadd.f32 %v392, %v698
        %v700 = vpop.f32.mrb[0].mxu0
        %v701 = vadd.f32 %v396, %v700
        %702 = vmatprep.mubr.bf16.mxu0 0
        %703 = vmatmul.mubr.bf16.gmra.mrb[0].mxu0 %v546
        %v704 = vpop.f32.mrb[0].mxu0
        %v705 = vadd.f32 %v392, %v704
        %v706 = vpop.f32.mrb[0].mxu0
        %v707 = vadd.f32 %v396, %v706
        %v708 = vpop.f32.mrb[0].mxu0
        %v709 = vadd.f32 %v392, %v708
        %v710 = vpop.f32.mrb[0].mxu0
        %v711 = vadd.f32 %v396, %v710
        %712 = vmatprep.mubr.bf16.mxu0 0
        %713 = vmatmul.mubr.bf16.gmra.mrb[0].mxu0 %v549
        %v714 = vpop.f32.mrb[0].mxu0
        %v715 = vadd.f32 %v392, %v714
        %v716 = vpop.f32.mrb[0].mxu0
        %v717 = vadd.f32 %v396, %v716
        %v718 = vpop.f32.mrb[0].mxu0
        %v719 = vadd.f32 %v392, %v718
        %v720 = vpop.f32.mrb[0].mxu0
        %v721 = vadd.f32 %v396, %v720
        %722 = vmatprep.mubr.bf16.mxu0 0
        %723 = vmatmul.mubr.bf16.gmra.mrb[0].mxu0 %v552
        %v724 = vpop.f32.mrb[0].mxu0
        %v725 = vadd.f32 %v392, %v724
        %v726 = vpop.f32.mrb[0].mxu0
        %v727 = vadd.f32 %v396, %v726
        %v728 = vpop.f32.mrb[0].mxu0
        %v729 = vadd.f32 %v392, %v728
        %v730 = vpop.f32.mrb[0].mxu0
        %v731 = vadd.f32 %v396, %v730
        %732 = vmatprep.mubr.bf16.mxu0 0
        %733 = vmatmul.mubr.bf16.gmra.mrb[0].mxu0 %v555
        %v734 = vpop.f32.mrb[0].mxu0
        %v735 = vadd.f32 %v392, %v734
        %v736 = vpop.f32.mrb[0].mxu0
        %v737 = vadd.f32 %v396, %v736
        %v738 = vpop.f32.mrb[0].mxu0
        %v739 = vadd.f32 %v392, %v738
        %v740 = vpop.f32.mrb[0].mxu0
        %v741 = vadd.f32 %v396, %v740
        %742 = vmatprep.mubr.bf16.mxu0 0
        %743 = vmatmul.mubr.bf16.gmra.mrb[0].mxu0 %v558
        %v744 = vpop.f32.mrb[0].mxu0
        %v745 = vadd.f32 %v392, %v744
        %v746 = vpop.f32.mrb[0].mxu0
        %v747 = vadd.f32 %v396, %v746
        %v748 = vpop.f32.mrb[0].mxu0
        %v749 = vadd.f32 %v392, %v748
        %v750 = vpop.f32.mrb[0].mxu0
        %v751 = vadd.f32 %v396, %v750
        %752 = vdwg.mxu0
        %v753 = vmax.f32 %v595, 0.0
        %v754 = vmax.f32 %v597, 0.0
        %v755 = vmax.f32 %v599, 0.0
        %v756 = vmax.f32 %v601, 0.0
        %v757 = vmax.f32 %v605, 0.0
        %v758 = vmax.f32 %v607, 0.0
        %v759 = vmax.f32 %v609, 0.0
        %v760 = vmax.f32 %v611, 0.0
        %v761 = vmax.f32 %v615, 0.0
        %v762 = vmax.f32 %v617, 0.0
        %v763 = vmax.f32 %v619, 0.0
        %v764 = vmax.f32 %v621, 0.0
        %v765 = vmax.f32 %v625, 0.0
        %v766 = vmax.f32 %v627, 0.0
        %v767 = vmax.f32 %v629, 0.0
        %v768 = vmax.f32 %v631, 0.0
        %v769 = vmax.f32 %v635, 0.0
        %v770 = vmax.f32 %v637, 0.0
        %v771 = vmax.f32 %v639, 0.0
        %v772 = vmax.f32 %v641, 0.0
        %v773 = vmax.f32 %v645, 0.0
        %v774 = vmax.f32 %v647, 0.0
        %v775 = vmax.f32 %v649, 0.0
        %v776 = vmax.f32 %v651, 0.0
        %v777 = vmax.f32 %v655, 0.0
        %v778 = vmax.f32 %v657, 0.0
        %v779 = vmax.f32 %v659, 0.0
        %v780 = vmax.f32 %v661, 0.0
        %v781 = vmax.f32 %v665, 0.0
        %v782 = vmax.f32 %v667, 0.0
        %v783 = vmax.f32 %v669, 0.0
        %v784 = vmax.f32 %v671, 0.0
        %v785 = vmax.f32 %v675, 0.0
        %v786 = vmax.f32 %v677, 0.0
        %v787 = vmax.f32 %v679, 0.0
        %v788 = vmax.f32 %v681, 0.0
        %v789 = vmax.f32 %v685, 0.0
        %v790 = vmax.f32 %v687, 0.0
        %v791 = vmax.f32 %v689, 0.0
        %v792 = vmax.f32 %v691, 0.0
        %v793 = vmax.f32 %v695, 0.0
        %v794 = vmax.f32 %v697, 0.0
        %v795 = vmax.f32 %v699, 0.0
        %v796 = vmax.f32 %v701, 0.0
        %v797 = vmax.f32 %v705, 0.0
        %v798 = vmax.f32 %v707, 0.0
        %v799 = vmax.f32 %v709, 0.0
        %v800 = vmax.f32 %v711, 0.0
        %v801 = vmax.f32 %v715, 0.0
        %v802 = vmax.f32 %v717, 0.0
        %v803 = vmax.f32 %v719, 0.0
        %v804 = vmax.f32 %v721, 0.0
        %v805 = vmax.f32 %v725, 0.0
        %v806 = vmax.f32 %v727, 0.0
        %v807 = vmax.f32 %v729, 0.0
        %v808 = vmax.f32 %v731, 0.0
        %v809 = vmax.f32 %v735, 0.0
        %v810 = vmax.f32 %v737, 0.0
        %v811 = vmax.f32 %v739, 0.0
        %v812 = vmax.f32 %v741, 0.0
        %v813 = vmax.f32 %v745, 0.0
        %v814 = vmax.f32 %v747, 0.0
        %v815 = vmax.f32 %v749, 0.0
        %v816 = vmax.f32 %v751, 0.0
        %v817 = vpack.c.bf16 %v755, %v753
        %v818 = vpack.c.bf16 %v756, %v754
        %v819 = vpack.c.bf16 %v759, %v757
        %v820 = vpack.c.bf16 %v760, %v758
        %v821 = vpack.c.bf16 %v763, %v761
        %v822 = vpack.c.bf16 %v764, %v762
        %v823 = vpack.c.bf16 %v767, %v765
        %v824 = vpack.c.bf16 %v768, %v766
        %v825 = vpack.c.bf16 %v771, %v769
        %v826 = vpack.c.bf16 %v772, %v770
        %v827 = vpack.c.bf16 %v775, %v773
        %v828 = vpack.c.bf16 %v776, %v774
        %v829 = vpack.c.bf16 %v779, %v777
        %v830 = vpack.c.bf16 %v780, %v778
        %v831 = vpack.c.bf16 %v783, %v781
        %v832 = vpack.c.bf16 %v784, %v782
        %v833 = vpack.c.bf16 %v787, %v785
        %v834 = vpack.c.bf16 %v788, %v786
        %v835 = vpack.c.bf16 %v791, %v789
        %v836 = vpack.c.bf16 %v792, %v790
        %v837 = vpack.c.bf16 %v795, %v793
        %v838 = vpack.c.bf16 %v796, %v794
        %v839 = vpack.c.bf16 %v799, %v797
        %v840 = vpack.c.bf16 %v800, %v798
        %v841 = vpack.c.bf16 %v803, %v801
        %v842 = vpack.c.bf16 %v804, %v802
        %v843 = vpack.c.bf16 %v807, %v805
        %v844 = vpack.c.bf16 %v808, %v806
        %v845 = vpack.c.bf16 %v811, %v809
        %v846 = vpack.c.bf16 %v812, %v810
        %v847 = vpack.c.bf16 %v815, %v813
        %v848 = vpack.c.bf16 %v816, %v814
        %v849 = vld [vmem:[%s3] sm:$0xff]
        %v850 = vld [vmem:[%s3 + $0x8] sm:$0xff]
        %v851 = vld [vmem:[%s3 + $0x10] sm:$0xff]
        %v852 = vld [vmem:[%s3 + $0x18] sm:$0xff]
        %v853 = vld [vmem:[%s3 + $0x20] sm:$0xff]
        %v854 = vld [vmem:[%s3 + $0x28] sm:$0xff]
        %v855 = vld [vmem:[%s3 + $0x30] sm:$0xff]
        %v856 = vld [vmem:[%s3 + $0x38] sm:$0xff]
        %v857 = vld [vmem:[%s3 + $0x40] sm:$0xff]
        %v858 = vld [vmem:[%s3 + $0x48] sm:$0xff]
        %v859 = vld [vmem:[%s3 + $0x50] sm:$0xff]
        %v860 = vld [vmem:[%s3 + $0x58] sm:$0xff]
        %v861 = vld [vmem:[%s3 + $0x60] sm:$0xff]
        %v862 = vld [vmem:[%s3 + $0x68] sm:$0xff]
        %v863 = vld [vmem:[%s3 + $0x70] sm:$0xff]
        %v864 = vld [vmem:[%s3 + $0x78] sm:$0xff]
        %v865 = vld [vmem:[%s3 + $0x80] sm:$0xff]
        %v866 = vld [vmem:[%s3 + $0x88] sm:$0xff]
        %v867 = vld [vmem:[%s3 + $0x90] sm:$0xff]
        %v868 = vld [vmem:[%s3 + $0x98] sm:$0xff]
        %v869 = vld [vmem:[%s3 + $0xa0] sm:$0xff]
        %v870 = vld [vmem:[%s3 + $0xa8] sm:$0xff]
        %v871 = vld [vmem:[%s3 + $0xb0] sm:$0xff]
        %v872 = vld [vmem:[%s3 + $0xb8] sm:$0xff]
        %v873 = vld [vmem:[%s3 + $0xc0] sm:$0xff]
        %v874 = vld [vmem:[%s3 + $0xc8] sm:$0xff]
        %v875 = vld [vmem:[%s3 + $0xd0] sm:$0xff]
        %v876 = vld [vmem:[%s3 + $0xd8] sm:$0xff]
        %v877 = vld [vmem:[%s3 + $0xe0] sm:$0xff]
        %v878 = vld [vmem:[%s3 + $0xe8] sm:$0xff]
        %v879 = vld [vmem:[%s3 + $0xf0] sm:$0xff]
        %v880 = vld [vmem:[%s3 + $0xf8] sm:$0xff]
        %v881 = vld [vmem:[%s4] sm:$0x3]
        %v883 = vlaneseq
        %v884 = vshrl.u32 %v883, 7
        %v885 = vsub.s32 0, %v884
        %v886 = vrot.slane %v881, %v885
        %v887 = vlaneseq
        %v888 = vshrl.u32 %v887, 7
        %v889 = vsub.s32 1, %v888
        %v890 = vrot.slane %v881, %v889
        %v925 = vunpack.c.l.b16 %v849
        %v926 = vunpack.c.h.b16 %v849
        %v927 = vunpack.c.l.b16 %v850
        %v928 = vunpack.c.h.b16 %v850
        %v929 = vunpack.c.l.b16 %v851
        %v930 = vunpack.c.h.b16 %v851
        %v931 = vunpack.c.l.b16 %v852
        %v932 = vunpack.c.h.b16 %v852
        %v933 = vunpack.c.l.b16 %v853
        %v934 = vunpack.c.h.b16 %v853
        %v935 = vunpack.c.l.b16 %v854
        %v936 = vunpack.c.h.b16 %v854
        %v937 = vunpack.c.l.b16 %v855
        %v938 = vunpack.c.h.b16 %v855
        %v939 = vunpack.c.l.b16 %v856
        %v940 = vunpack.c.h.b16 %v856
        %v941 = vunpack.c.l.b16 %v857
        %v942 = vunpack.c.h.b16 %v857
        %v943 = vunpack.c.l.b16 %v858
        %v944 = vunpack.c.h.b16 %v858
        %v945 = vunpack.c.l.b16 %v859
        %v946 = vunpack.c.h.b16 %v859
        %v947 = vunpack.c.l.b16 %v860
        %v948 = vunpack.c.h.b16 %v860
        %v949 = vunpack.c.l.b16 %v861
        %v950 = vunpack.c.h.b16 %v861
        %v951 = vunpack.c.l.b16 %v862
        %v952 = vunpack.c.h.b16 %v862
        %v953 = vunpack.c.l.b16 %v863
        %v954 = vunpack.c.h.b16 %v863
        %v955 = vunpack.c.l.b16 %v864
        %v956 = vunpack.c.h.b16 %v864
        %v957 = vunpack.c.l.b16 %v865
        %v958 = vunpack.c.h.b16 %v865
        %v959 = vunpack.c.l.b16 %v866
        %v960 = vunpack.c.h.b16 %v866
        %v961 = vunpack.c.l.b16 %v867
        %v962 = vunpack.c.h.b16 %v867
        %v963 = vunpack.c.l.b16 %v868
        %v964 = vunpack.c.h.b16 %v868
        %v965 = vunpack.c.l.b16 %v869
        %v966 = vunpack.c.h.b16 %v869
        %v967 = vunpack.c.l.b16 %v870
        %v968 = vunpack.c.h.b16 %v870
        %v969 = vunpack.c.l.b16 %v871
        %v970 = vunpack.c.h.b16 %v871
        %v971 = vunpack.c.l.b16 %v872
        %v972 = vunpack.c.h.b16 %v872
        %v973 = vunpack.c.l.b16 %v873
        %v974 = vunpack.c.h.b16 %v873
        %v975 = vunpack.c.l.b16 %v874
        %v976 = vunpack.c.h.b16 %v874
        %v977 = vunpack.c.l.b16 %v875
        %v978 = vunpack.c.h.b16 %v875
        %v979 = vunpack.c.l.b16 %v876
        %v980 = vunpack.c.h.b16 %v876
        %v981 = vunpack.c.l.b16 %v877
        %v982 = vunpack.c.h.b16 %v877
        %v983 = vunpack.c.l.b16 %v878
        %v984 = vunpack.c.h.b16 %v878
        %v985 = vunpack.c.l.b16 %v879
        %v986 = vunpack.c.h.b16 %v879
        %v987 = vunpack.c.l.b16 %v880
        %v988 = vunpack.c.h.b16 %v880
        %v989 = vpack.c.b16 %v927, %v925
        %v990 = vpack.c.b16 %v928, %v926
        %v991 = vpack.c.b16 %v931, %v929
        %v992 = vpack.c.b16 %v932, %v930
        %v993 = vpack.c.b16 %v935, %v933
        %v994 = vpack.c.b16 %v936, %v934
        %v995 = vpack.c.b16 %v939, %v937
        %v996 = vpack.c.b16 %v940, %v938
        %v997 = vpack.c.b16 %v943, %v941
        %v998 = vpack.c.b16 %v944, %v942
        %v999 = vpack.c.b16 %v947, %v945
        %v1000 = vpack.c.b16 %v948, %v946
        %v1001 = vpack.c.b16 %v951, %v949
        %v1002 = vpack.c.b16 %v952, %v950
        %v1003 = vpack.c.b16 %v955, %v953
        %v1004 = vpack.c.b16 %v956, %v954
        %v1005 = vpack.c.b16 %v959, %v957
        %v1006 = vpack.c.b16 %v960, %v958
        %v1007 = vpack.c.b16 %v963, %v961
        %v1008 = vpack.c.b16 %v964, %v962
        %v1009 = vpack.c.b16 %v967, %v965
        %v1010 = vpack.c.b16 %v968, %v966
        %v1011 = vpack.c.b16 %v971, %v969
        %v1012 = vpack.c.b16 %v972, %v970
        %v1013 = vpack.c.b16 %v975, %v973
        %v1014 = vpack.c.b16 %v976, %v974
        %v1015 = vpack.c.b16 %v979, %v977
        %v1016 = vpack.c.b16 %v980, %v978
        %v1017 = vpack.c.b16 %v983, %v981
        %v1018 = vpack.c.b16 %v984, %v982
        %v1019 = vpack.c.b16 %v987, %v985
        %v1020 = vpack.c.b16 %v988, %v986
        %1053 = vmatprep.subr.bf16.mxu0 %v990
        %1054 = vmatpush1.bf16.msra.mxu0 %v989
        %1055 = vmatprep.subr.bf16.mxu0 %v992
        %1056 = vmatpush1.bf16.msra.mxu0 %v991
        %1057 = vmatprep.subr.bf16.mxu0 %v994
        %1058 = vmatpush1.bf16.msra.mxu0 %v993
        %1059 = vmatprep.subr.bf16.mxu0 %v996
        %1060 = vmatpush1.bf16.msra.mxu0 %v995
        %1061 = vmatprep.subr.bf16.mxu0 %v998
        %1062 = vmatpush1.bf16.msra.mxu0 %v997
        %1063 = vmatprep.subr.bf16.mxu0 %v1000
        %1064 = vmatpush1.bf16.msra.mxu0 %v999
        %1065 = vmatprep.subr.bf16.mxu0 %v1002
        %1066 = vmatpush1.bf16.msra.mxu0 %v1001
        %1067 = vmatprep.subr.bf16.mxu0 %v1004
        %1068 = vmatpush1.bf16.msra.mxu0 %v1003
        %1069 = vmatprep.subr.bf16.mxu0 %v1006
        %1070 = vmatpush1.bf16.msra.mxu0 %v1005
        %1071 = vmatprep.subr.bf16.mxu0 %v1008
        %1072 = vmatpush1.bf16.msra.mxu0 %v1007
        %1073 = vmatprep.subr.bf16.mxu0 %v1010
        %1074 = vmatpush1.bf16.msra.mxu0 %v1009
        %1075 = vmatprep.subr.bf16.mxu0 %v1012
        %1076 = vmatpush1.bf16.msra.mxu0 %v1011
        %1077 = vmatprep.subr.bf16.mxu0 %v1014
        %1078 = vmatpush1.bf16.msra.mxu0 %v1013
        %1079 = vmatprep.subr.bf16.mxu0 %v1016
        %1080 = vmatpush1.bf16.msra.mxu0 %v1015
        %1081 = vmatprep.subr.bf16.mxu0 %v1018
        %1082 = vmatpush1.bf16.msra.mxu0 %v1017
        %1083 = vmatprep.subr.bf16.mxu0 %v1020
        %1084 = vmatpush1.bf16.msra.mxu0 %v1019
        %1085 = vmatprep.mubr.bf16.mxu0 %v818
        %1086 = vmatmul.mubr.bf16.gmra.mrb[0].mxu0 %v817
        %v1087 = vpop.f32.mrb[0].mxu0
        %v1088 = vadd.f32 %v886, %v1087
        %v1089 = vpop.f32.mrb[0].mxu0
        %v1090 = vadd.f32 %v890, %v1089
        %v1091 = vpop.f32.mrb[0].mxu0
        %v1092 = vadd.f32 %v886, %v1091
        %v1093 = vpop.f32.mrb[0].mxu0
        %v1094 = vadd.f32 %v890, %v1093
        %1095 = vmatprep.mubr.bf16.mxu0 %v820
        %1096 = vmatmul.mubr.bf16.gmra.mrb[0].mxu0 %v819
        %v1097 = vpop.f32.mrb[0].mxu0
        %v1098 = vadd.f32 %v886, %v1097
        %v1099 = vpop.f32.mrb[0].mxu0
        %v1100 = vadd.f32 %v890, %v1099
        %v1101 = vpop.f32.mrb[0].mxu0
        %v1102 = vadd.f32 %v886, %v1101
        %v1103 = vpop.f32.mrb[0].mxu0
        %v1104 = vadd.f32 %v890, %v1103
        %1105 = vmatprep.mubr.bf16.mxu0 %v822
        %1106 = vmatmul.mubr.bf16.gmra.mrb[0].mxu0 %v821
        %v1107 = vpop.f32.mrb[0].mxu0
        %v1108 = vadd.f32 %v886, %v1107
        %v1109 = vpop.f32.mrb[0].mxu0
        %v1110 = vadd.f32 %v890, %v1109
        %v1111 = vpop.f32.mrb[0].mxu0
        %v1112 = vadd.f32 %v886, %v1111
        %v1113 = vpop.f32.mrb[0].mxu0
        %v1114 = vadd.f32 %v890, %v1113
        %1115 = vmatprep.mubr.bf16.mxu0 %v824
        %1116 = vmatmul.mubr.bf16.gmra.mrb[0].mxu0 %v823
        %v1117 = vpop.f32.mrb[0].mxu0
        %v1118 = vadd.f32 %v886, %v1117
        %v1119 = vpop.f32.mrb[0].mxu0
        %v1120 = vadd.f32 %v890, %v1119
        %v1121 = vpop.f32.mrb[0].mxu0
        %v1122 = vadd.f32 %v886, %v1121
        %v1123 = vpop.f32.mrb[0].mxu0
        %v1124 = vadd.f32 %v890, %v1123
        %1125 = vmatprep.mubr.bf16.mxu0 %v826
        %1126 = vmatmul.mubr.bf16.gmra.mrb[0].mxu0 %v825
        %v1127 = vpop.f32.mrb[0].mxu0
        %v1128 = vadd.f32 %v886, %v1127
        %v1129 = vpop.f32.mrb[0].mxu0
        %v1130 = vadd.f32 %v890, %v1129
        %v1131 = vpop.f32.mrb[0].mxu0
        %v1132 = vadd.f32 %v886, %v1131
        %v1133 = vpop.f32.mrb[0].mxu0
        %v1134 = vadd.f32 %v890, %v1133
        %1135 = vmatprep.mubr.bf16.mxu0 %v828
        %1136 = vmatmul.mubr.bf16.gmra.mrb[0].mxu0 %v827
        %v1137 = vpop.f32.mrb[0].mxu0
        %v1138 = vadd.f32 %v886, %v1137
        %v1139 = vpop.f32.mrb[0].mxu0
        %v1140 = vadd.f32 %v890, %v1139
        %v1141 = vpop.f32.mrb[0].mxu0
        %v1142 = vadd.f32 %v886, %v1141
        %v1143 = vpop.f32.mrb[0].mxu0
        %v1144 = vadd.f32 %v890, %v1143
        %1145 = vmatprep.mubr.bf16.mxu0 %v830
        %1146 = vmatmul.mubr.bf16.gmra.mrb[0].mxu0 %v829
        %v1147 = vpop.f32.mrb[0].mxu0
        %v1148 = vadd.f32 %v886, %v1147
        %v1149 = vpop.f32.mrb[0].mxu0
        %v1150 = vadd.f32 %v890, %v1149
        %v1151 = vpop.f32.mrb[0].mxu0
        %v1152 = vadd.f32 %v886, %v1151
        %v1153 = vpop.f32.mrb[0].mxu0
        %v1154 = vadd.f32 %v890, %v1153
        %1155 = vmatprep.mubr.bf16.mxu0 %v832
        %1156 = vmatmul.mubr.bf16.gmra.mrb[0].mxu0 %v831
        %v1157 = vpop.f32.mrb[0].mxu0
        %v1158 = vadd.f32 %v886, %v1157
        %v1159 = vpop.f32.mrb[0].mxu0
        %v1160 = vadd.f32 %v890, %v1159
        %v1161 = vpop.f32.mrb[0].mxu0
        %v1162 = vadd.f32 %v886, %v1161
        %v1163 = vpop.f32.mrb[0].mxu0
        %v1164 = vadd.f32 %v890, %v1163
        %1165 = vmatprep.mubr.bf16.mxu0 %v834
        %1166 = vmatmul.mubr.bf16.gmra.mrb[0].mxu0 %v833
        %v1167 = vpop.f32.mrb[0].mxu0
        %v1168 = vadd.f32 %v886, %v1167
        %v1169 = vpop.f32.mrb[0].mxu0
        %v1170 = vadd.f32 %v890, %v1169
        %v1171 = vpop.f32.mrb[0].mxu0
        %v1172 = vadd.f32 %v886, %v1171
        %v1173 = vpop.f32.mrb[0].mxu0
        %v1174 = vadd.f32 %v890, %v1173
        %1175 = vmatprep.mubr.bf16.mxu0 %v836
        %1176 = vmatmul.mubr.bf16.gmra.mrb[0].mxu0 %v835
        %v1177 = vpop.f32.mrb[0].mxu0
        %v1178 = vadd.f32 %v886, %v1177
        %v1179 = vpop.f32.mrb[0].mxu0
        %v1180 = vadd.f32 %v890, %v1179
        %v1181 = vpop.f32.mrb[0].mxu0
        %v1182 = vadd.f32 %v886, %v1181
        %v1183 = vpop.f32.mrb[0].mxu0
        %v1184 = vadd.f32 %v890, %v1183
        %1185 = vmatprep.mubr.bf16.mxu0 %v838
        %1186 = vmatmul.mubr.bf16.gmra.mrb[0].mxu0 %v837
        %v1187 = vpop.f32.mrb[0].mxu0
        %v1188 = vadd.f32 %v886, %v1187
        %v1189 = vpop.f32.mrb[0].mxu0
        %v1190 = vadd.f32 %v890, %v1189
        %v1191 = vpop.f32.mrb[0].mxu0
        %v1192 = vadd.f32 %v886, %v1191
        %v1193 = vpop.f32.mrb[0].mxu0
        %v1194 = vadd.f32 %v890, %v1193
        %1195 = vmatprep.mubr.bf16.mxu0 %v840
        %1196 = vmatmul.mubr.bf16.gmra.mrb[0].mxu0 %v839
        %v1197 = vpop.f32.mrb[0].mxu0
        %v1198 = vadd.f32 %v886, %v1197
        %v1199 = vpop.f32.mrb[0].mxu0
        %v1200 = vadd.f32 %v890, %v1199
        %v1201 = vpop.f32.mrb[0].mxu0
        %v1202 = vadd.f32 %v886, %v1201
        %v1203 = vpop.f32.mrb[0].mxu0
        %v1204 = vadd.f32 %v890, %v1203
        %1205 = vmatprep.mubr.bf16.mxu0 %v842
        %1206 = vmatmul.mubr.bf16.gmra.mrb[0].mxu0 %v841
        %v1207 = vpop.f32.mrb[0].mxu0
        %v1208 = vadd.f32 %v886, %v1207
        %v1209 = vpop.f32.mrb[0].mxu0
        %v1210 = vadd.f32 %v890, %v1209
        %v1211 = vpop.f32.mrb[0].mxu0
        %v1212 = vadd.f32 %v886, %v1211
        %v1213 = vpop.f32.mrb[0].mxu0
        %v1214 = vadd.f32 %v890, %v1213
        %1215 = vmatprep.mubr.bf16.mxu0 %v844
        %1216 = vmatmul.mubr.bf16.gmra.mrb[0].mxu0 %v843
        %v1217 = vpop.f32.mrb[0].mxu0
        %v1218 = vadd.f32 %v886, %v1217
        %v1219 = vpop.f32.mrb[0].mxu0
        %v1220 = vadd.f32 %v890, %v1219
        %v1221 = vpop.f32.mrb[0].mxu0
        %v1222 = vadd.f32 %v886, %v1221
        %v1223 = vpop.f32.mrb[0].mxu0
        %v1224 = vadd.f32 %v890, %v1223
        %1225 = vmatprep.mubr.bf16.mxu0 %v846
        %1226 = vmatmul.mubr.bf16.gmra.mrb[0].mxu0 %v845
        %v1227 = vpop.f32.mrb[0].mxu0
        %v1228 = vadd.f32 %v886, %v1227
        %v1229 = vpop.f32.mrb[0].mxu0
        %v1230 = vadd.f32 %v890, %v1229
        %v1231 = vpop.f32.mrb[0].mxu0
        %v1232 = vadd.f32 %v886, %v1231
        %v1233 = vpop.f32.mrb[0].mxu0
        %v1234 = vadd.f32 %v890, %v1233
        %1235 = vmatprep.mubr.bf16.mxu0 %v848
        %1236 = vmatmul.mubr.bf16.gmra.mrb[0].mxu0 %v847
        %v1237 = vpop.f32.mrb[0].mxu0
        %v1238 = vadd.f32 %v886, %v1237
        %v1239 = vpop.f32.mrb[0].mxu0
        %v1240 = vadd.f32 %v890, %v1239
        %v1241 = vpop.f32.mrb[0].mxu0
        %v1242 = vadd.f32 %v886, %v1241
        %v1243 = vpop.f32.mrb[0].mxu0
        %v1244 = vadd.f32 %v890, %v1243
        %1245 = vdwg.mxu0
        %v1246 = vmax.f32 %v1088, 0.0
        %v1247 = vmax.f32 %v1090, 0.0
        %v1248 = vmax.f32 %v1092, 0.0
        %v1249 = vmax.f32 %v1094, 0.0
        %v1250 = vmax.f32 %v1098, 0.0
        %v1251 = vmax.f32 %v1100, 0.0
        %v1252 = vmax.f32 %v1102, 0.0
        %v1253 = vmax.f32 %v1104, 0.0
        %v1254 = vmax.f32 %v1108, 0.0
        %v1255 = vmax.f32 %v1110, 0.0
        %v1256 = vmax.f32 %v1112, 0.0
        %v1257 = vmax.f32 %v1114, 0.0
        %v1258 = vmax.f32 %v1118, 0.0
        %v1259 = vmax.f32 %v1120, 0.0
        %v1260 = vmax.f32 %v1122, 0.0
        %v1261 = vmax.f32 %v1124, 0.0
        %v1262 = vmax.f32 %v1128, 0.0
        %v1263 = vmax.f32 %v1130, 0.0
        %v1264 = vmax.f32 %v1132, 0.0
        %v1265 = vmax.f32 %v1134, 0.0
        %v1266 = vmax.f32 %v1138, 0.0
        %v1267 = vmax.f32 %v1140, 0.0
        %v1268 = vmax.f32 %v1142, 0.0
        %v1269 = vmax.f32 %v1144, 0.0
        %v1270 = vmax.f32 %v1148, 0.0
        %v1271 = vmax.f32 %v1150, 0.0
        %v1272 = vmax.f32 %v1152, 0.0
        %v1273 = vmax.f32 %v1154, 0.0
        %v1274 = vmax.f32 %v1158, 0.0
        %v1275 = vmax.f32 %v1160, 0.0
        %v1276 = vmax.f32 %v1162, 0.0
        %v1277 = vmax.f32 %v1164, 0.0
        %v1278 = vmax.f32 %v1168, 0.0
        %v1279 = vmax.f32 %v1170, 0.0
        %v1280 = vmax.f32 %v1172, 0.0
        %v1281 = vmax.f32 %v1174, 0.0
        %v1282 = vmax.f32 %v1178, 0.0
        %v1283 = vmax.f32 %v1180, 0.0
        %v1284 = vmax.f32 %v1182, 0.0
        %v1285 = vmax.f32 %v1184, 0.0
        %v1286 = vmax.f32 %v1188, 0.0
        %v1287 = vmax.f32 %v1190, 0.0
        %v1288 = vmax.f32 %v1192, 0.0
        %v1289 = vmax.f32 %v1194, 0.0
        %v1290 = vmax.f32 %v1198, 0.0
        %v1291 = vmax.f32 %v1200, 0.0
        %v1292 = vmax.f32 %v1202, 0.0
        %v1293 = vmax.f32 %v1204, 0.0
        %v1294 = vmax.f32 %v1208, 0.0
        %v1295 = vmax.f32 %v1210, 0.0
        %v1296 = vmax.f32 %v1212, 0.0
        %v1297 = vmax.f32 %v1214, 0.0
        %v1298 = vmax.f32 %v1218, 0.0
        %v1299 = vmax.f32 %v1220, 0.0
        %v1300 = vmax.f32 %v1222, 0.0
        %v1301 = vmax.f32 %v1224, 0.0
        %v1302 = vmax.f32 %v1228, 0.0
        %v1303 = vmax.f32 %v1230, 0.0
        %v1304 = vmax.f32 %v1232, 0.0
        %v1305 = vmax.f32 %v1234, 0.0
        %v1306 = vmax.f32 %v1238, 0.0
        %v1307 = vmax.f32 %v1240, 0.0
        %v1308 = vmax.f32 %v1242, 0.0
        %v1309 = vmax.f32 %v1244, 0.0
        %v1310 = vpack.c.bf16 %v1248, %v1246
        %v1311 = vpack.c.bf16 %v1249, %v1247
        %v1312 = vpack.c.bf16 %v1252, %v1250
        %v1313 = vpack.c.bf16 %v1253, %v1251
        %v1314 = vpack.c.bf16 %v1256, %v1254
        %v1315 = vpack.c.bf16 %v1257, %v1255
        %v1316 = vpack.c.bf16 %v1260, %v1258
        %v1317 = vpack.c.bf16 %v1261, %v1259
        %v1318 = vpack.c.bf16 %v1264, %v1262
        %v1319 = vpack.c.bf16 %v1265, %v1263
        %v1320 = vpack.c.bf16 %v1268, %v1266
        %v1321 = vpack.c.bf16 %v1269, %v1267
        %v1322 = vpack.c.bf16 %v1272, %v1270
        %v1323 = vpack.c.bf16 %v1273, %v1271
        %v1324 = vpack.c.bf16 %v1276, %v1274
        %v1325 = vpack.c.bf16 %v1277, %v1275
        %v1326 = vpack.c.bf16 %v1280, %v1278
        %v1327 = vpack.c.bf16 %v1281, %v1279
        %v1328 = vpack.c.bf16 %v1284, %v1282
        %v1329 = vpack.c.bf16 %v1285, %v1283
        %v1330 = vpack.c.bf16 %v1288, %v1286
        %v1331 = vpack.c.bf16 %v1289, %v1287
        %v1332 = vpack.c.bf16 %v1292, %v1290
        %v1333 = vpack.c.bf16 %v1293, %v1291
        %v1334 = vpack.c.bf16 %v1296, %v1294
        %v1335 = vpack.c.bf16 %v1297, %v1295
        %v1336 = vpack.c.bf16 %v1300, %v1298
        %v1337 = vpack.c.bf16 %v1301, %v1299
        %v1338 = vpack.c.bf16 %v1304, %v1302
        %v1339 = vpack.c.bf16 %v1305, %v1303
        %v1340 = vpack.c.bf16 %v1308, %v1306
        %v1341 = vpack.c.bf16 %v1309, %v1307
        %v1342 = vld [vmem:[%s5] sm:$0xf]
        %v1343 = vld [vmem:[%s5 + $0x4] sm:$0xf]
        %v1344 = vld [vmem:[%s5 + $0x8] sm:$0xf]
        %v1345 = vld [vmem:[%s5 + $0xc] sm:$0xf]
        %v1346 = vld [vmem:[%s5 + $0x10] sm:$0xf]
        %v1347 = vld [vmem:[%s5 + $0x14] sm:$0xf]
        %v1348 = vld [vmem:[%s5 + $0x18] sm:$0xf]
        %v1349 = vld [vmem:[%s5 + $0x1c] sm:$0xf]
        %v1350 = vld [vmem:[%s5 + $0x20] sm:$0xf]
        %v1351 = vld [vmem:[%s5 + $0x24] sm:$0xf]
        %v1352 = vld [vmem:[%s5 + $0x28] sm:$0xf]
        %v1353 = vld [vmem:[%s5 + $0x2c] sm:$0xf]
        %v1354 = vld [vmem:[%s5 + $0x30] sm:$0xf]
        %v1355 = vld [vmem:[%s5 + $0x34] sm:$0xf]
        %v1356 = vld [vmem:[%s5 + $0x38] sm:$0xf]
        %v1357 = vld [vmem:[%s5 + $0x3c] sm:$0xf]
        %v1358 = vld [vmem:[%s5 + $0x40] sm:$0xf]
        %v1359 = vld [vmem:[%s5 + $0x44] sm:$0xf]
        %v1360 = vld [vmem:[%s5 + $0x48] sm:$0xf]
        %v1361 = vld [vmem:[%s5 + $0x4c] sm:$0xf]
        %v1362 = vld [vmem:[%s5 + $0x50] sm:$0xf]
        %v1363 = vld [vmem:[%s5 + $0x54] sm:$0xf]
        %v1364 = vld [vmem:[%s5 + $0x58] sm:$0xf]
        %v1365 = vld [vmem:[%s5 + $0x5c] sm:$0xf]
        %v1366 = vld [vmem:[%s5 + $0x60] sm:$0xf]
        %v1367 = vld [vmem:[%s5 + $0x64] sm:$0xf]
        %v1368 = vld [vmem:[%s5 + $0x68] sm:$0xf]
        %v1369 = vld [vmem:[%s5 + $0x6c] sm:$0xf]
        %v1370 = vld [vmem:[%s5 + $0x70] sm:$0xf]
        %v1371 = vld [vmem:[%s5 + $0x74] sm:$0xf]
        %v1372 = vld [vmem:[%s5 + $0x78] sm:$0xf]
        %v1373 = vld [vmem:[%s5 + $0x7c] sm:$0xf]
        %v1374 = vld [vmem:[%s6] sm:$0x1]
        %v1376 = vlaneseq
        %v1377 = vshrl.u32 %v1376, 7
        %v1378 = vsub.s32 0, %v1377
        %v1379 = vrot.slane %v1374, %v1378
        %v1413 = vunpack.c.l.b16 %v1342
        %v1414 = vunpack.c.l.b16 %v1343
        %v1415 = vunpack.c.l.b16 %v1344
        %v1416 = vunpack.c.l.b16 %v1345
        %v1417 = vunpack.c.l.b16 %v1346
        %v1418 = vunpack.c.l.b16 %v1347
        %v1419 = vunpack.c.l.b16 %v1348
        %v1420 = vunpack.c.l.b16 %v1349
        %v1421 = vunpack.c.l.b16 %v1350
        %v1422 = vunpack.c.l.b16 %v1351
        %v1423 = vunpack.c.l.b16 %v1352
        %v1424 = vunpack.c.l.b16 %v1353
        %v1425 = vunpack.c.l.b16 %v1354
        %v1426 = vunpack.c.l.b16 %v1355
        %v1427 = vunpack.c.l.b16 %v1356
        %v1428 = vunpack.c.l.b16 %v1357
        %v1429 = vunpack.c.l.b16 %v1358
        %v1430 = vunpack.c.l.b16 %v1359
        %v1431 = vunpack.c.l.b16 %v1360
        %v1432 = vunpack.c.l.b16 %v1361
        %v1433 = vunpack.c.l.b16 %v1362
        %v1434 = vunpack.c.l.b16 %v1363
        %v1435 = vunpack.c.l.b16 %v1364
        %v1436 = vunpack.c.l.b16 %v1365
        %v1437 = vunpack.c.l.b16 %v1366
        %v1438 = vunpack.c.l.b16 %v1367
        %v1439 = vunpack.c.l.b16 %v1368
        %v1440 = vunpack.c.l.b16 %v1369
        %v1441 = vunpack.c.l.b16 %v1370
        %v1442 = vunpack.c.l.b16 %v1371
        %v1443 = vunpack.c.l.b16 %v1372
        %v1444 = vunpack.c.l.b16 %v1373
        %v1445 = vpack.c.b16 %v1414, %v1413
        %v1446 = vpack.c.b16 %v1416, %v1415
        %v1447 = vpack.c.b16 %v1418, %v1417
        %v1448 = vpack.c.b16 %v1420, %v1419
        %v1449 = vpack.c.b16 %v1422, %v1421
        %v1450 = vpack.c.b16 %v1424, %v1423
        %v1451 = vpack.c.b16 %v1426, %v1425
        %v1452 = vpack.c.b16 %v1428, %v1427
        %v1453 = vpack.c.b16 %v1430, %v1429
        %v1454 = vpack.c.b16 %v1432, %v1431
        %v1455 = vpack.c.b16 %v1434, %v1433
        %v1456 = vpack.c.b16 %v1436, %v1435
        %v1457 = vpack.c.b16 %v1438, %v1437
        %v1458 = vpack.c.b16 %v1440, %v1439
        %v1459 = vpack.c.b16 %v1442, %v1441
        %v1460 = vpack.c.b16 %v1444, %v1443
        %1477 = vmatprep.subr.bf16.mxu0 0
        %1478 = vmatpush1.bf16.msra.mxu0 %v1445
        %1479 = vmatprep.subr.bf16.mxu0 0
        %1480 = vmatpush1.bf16.msra.mxu0 %v1446
        %1481 = vmatprep.subr.bf16.mxu0 0
        %1482 = vmatpush1.bf16.msra.mxu0 %v1447
        %1483 = vmatprep.subr.bf16.mxu0 0
        %1484 = vmatpush1.bf16.msra.mxu0 %v1448
        %1485 = vmatprep.subr.bf16.mxu0 0
        %1486 = vmatpush1.bf16.msra.mxu0 %v1449
        %1487 = vmatprep.subr.bf16.mxu0 0
        %1488 = vmatpush1.bf16.msra.mxu0 %v1450
        %1489 = vmatprep.subr.bf16.mxu0 0
        %1490 = vmatpush1.bf16.msra.mxu0 %v1451
        %1491 = vmatprep.subr.bf16.mxu0 0
        %1492 = vmatpush1.bf16.msra.mxu0 %v1452
        %1493 = vmatprep.subr.bf16.mxu0 0
        %1494 = vmatpush1.bf16.msra.mxu0 %v1453
        %1495 = vmatprep.subr.bf16.mxu0 0
        %1496 = vmatpush1.bf16.msra.mxu0 %v1454
        %1497 = vmatprep.subr.bf16.mxu0 0
        %1498 = vmatpush1.bf16.msra.mxu0 %v1455
        %1499 = vmatprep.subr.bf16.mxu0 0
        %1500 = vmatpush1.bf16.msra.mxu0 %v1456
        %1501 = vmatprep.subr.bf16.mxu0 0
        %1502 = vmatpush1.bf16.msra.mxu0 %v1457
        %1503 = vmatprep.subr.bf16.mxu0 0
        %1504 = vmatpush1.bf16.msra.mxu0 %v1458
        %1505 = vmatprep.subr.bf16.mxu0 0
        %1506 = vmatpush1.bf16.msra.mxu0 %v1459
        %1507 = vmatprep.subr.bf16.mxu0 0
        %1508 = vmatpush1.bf16.msra.mxu0 %v1460
        %1509 = vmatprep.mubr.bf16.mxu0 %v1311
        %1510 = vmatmul.mubr.bf16.gmra.mrb[0].mxu0 %v1310
        %v1511 = vpop.f32.mrb[0].mxu0
        %v1512 = vadd.f32 %v1379, %v1511
        %v1513 = vpop.f32.mrb[0].mxu0
        %v1514 = vpop.f32.mrb[0].mxu0
        %v1515 = vadd.f32 %v1379, %v1514
        %v1516 = vpop.f32.mrb[0].mxu0
        %1517 = vmatprep.mubr.bf16.mxu0 %v1313
        %1518 = vmatmul.mubr.bf16.gmra.mrb[0].mxu0 %v1312
        %v1519 = vpop.f32.mrb[0].mxu0
        %v1520 = vadd.f32 %v1379, %v1519
        %v1521 = vpop.f32.mrb[0].mxu0
        %v1522 = vpop.f32.mrb[0].mxu0
        %v1523 = vadd.f32 %v1379, %v1522
        %v1524 = vpop.f32.mrb[0].mxu0
        %1525 = vmatprep.mubr.bf16.mxu0 %v1315
        %1526 = vmatmul.mubr.bf16.gmra.mrb[0].mxu0 %v1314
        %v1527 = vpop.f32.mrb[0].mxu0
        %v1528 = vadd.f32 %v1379, %v1527
        %v1529 = vpop.f32.mrb[0].mxu0
        %v1530 = vpop.f32.mrb[0].mxu0
        %v1531 = vadd.f32 %v1379, %v1530
        %v1532 = vpop.f32.mrb[0].mxu0
        %1533 = vmatprep.mubr.bf16.mxu0 %v1317
        %1534 = vmatmul.mubr.bf16.gmra.mrb[0].mxu0 %v1316
        %v1535 = vpop.f32.mrb[0].mxu0
        %v1536 = vadd.f32 %v1379, %v1535
        %v1537 = vpop.f32.mrb[0].mxu0
        %v1538 = vpop.f32.mrb[0].mxu0
        %v1539 = vadd.f32 %v1379, %v1538
        %v1540 = vpop.f32.mrb[0].mxu0
        %1541 = vmatprep.mubr.bf16.mxu0 %v1319
        %1542 = vmatmul.mubr.bf16.gmra.mrb[0].mxu0 %v1318
        %v1543 = vpop.f32.mrb[0].mxu0
        %v1544 = vadd.f32 %v1379, %v1543
        %v1545 = vpop.f32.mrb[0].mxu0
        %v1546 = vpop.f32.mrb[0].mxu0
        %v1547 = vadd.f32 %v1379, %v1546
        %v1548 = vpop.f32.mrb[0].mxu0
        %1549 = vmatprep.mubr.bf16.mxu0 %v1321
        %1550 = vmatmul.mubr.bf16.gmra.mrb[0].mxu0 %v1320
        %v1551 = vpop.f32.mrb[0].mxu0
        %v1552 = vadd.f32 %v1379, %v1551
        %v1553 = vpop.f32.mrb[0].mxu0
        %v1554 = vpop.f32.mrb[0].mxu0
        %v1555 = vadd.f32 %v1379, %v1554
        %v1556 = vpop.f32.mrb[0].mxu0
        %1557 = vmatprep.mubr.bf16.mxu0 %v1323
        %1558 = vmatmul.mubr.bf16.gmra.mrb[0].mxu0 %v1322
        %v1559 = vpop.f32.mrb[0].mxu0
        %v1560 = vadd.f32 %v1379, %v1559
        %v1561 = vpop.f32.mrb[0].mxu0
        %v1562 = vpop.f32.mrb[0].mxu0
        %v1563 = vadd.f32 %v1379, %v1562
        %v1564 = vpop.f32.mrb[0].mxu0
        %1565 = vmatprep.mubr.bf16.mxu0 %v1325
        %1566 = vmatmul.mubr.bf16.gmra.mrb[0].mxu0 %v1324
        %v1567 = vpop.f32.mrb[0].mxu0
        %v1568 = vadd.f32 %v1379, %v1567
        %v1569 = vpop.f32.mrb[0].mxu0
        %v1570 = vpop.f32.mrb[0].mxu0
        %v1571 = vadd.f32 %v1379, %v1570
        %v1572 = vpop.f32.mrb[0].mxu0
        %1573 = vmatprep.mubr.bf16.mxu0 %v1327
        %1574 = vmatmul.mubr.bf16.gmra.mrb[0].mxu0 %v1326
        %v1575 = vpop.f32.mrb[0].mxu0
        %v1576 = vadd.f32 %v1379, %v1575
        %v1577 = vpop.f32.mrb[0].mxu0
        %v1578 = vpop.f32.mrb[0].mxu0
        %v1579 = vadd.f32 %v1379, %v1578
        %v1580 = vpop.f32.mrb[0].mxu0
        %1581 = vmatprep.mubr.bf16.mxu0 %v1329
        %1582 = vmatmul.mubr.bf16.gmra.mrb[0].mxu0 %v1328
        %v1583 = vpop.f32.mrb[0].mxu0
        %v1584 = vadd.f32 %v1379, %v1583
        %v1585 = vpop.f32.mrb[0].mxu0
        %v1586 = vpop.f32.mrb[0].mxu0
        %v1587 = vadd.f32 %v1379, %v1586
        %v1588 = vpop.f32.mrb[0].mxu0
        %1589 = vmatprep.mubr.bf16.mxu0 %v1331
        %1590 = vmatmul.mubr.bf16.gmra.mrb[0].mxu0 %v1330
        %v1591 = vpop.f32.mrb[0].mxu0
        %v1592 = vadd.f32 %v1379, %v1591
        %v1593 = vpop.f32.mrb[0].mxu0
        %v1594 = vpop.f32.mrb[0].mxu0
        %v1595 = vadd.f32 %v1379, %v1594
        %v1596 = vpop.f32.mrb[0].mxu0
        %1597 = vmatprep.mubr.bf16.mxu0 %v1333
        %1598 = vmatmul.mubr.bf16.gmra.mrb[0].mxu0 %v1332
        %v1599 = vpop.f32.mrb[0].mxu0
        %v1600 = vadd.f32 %v1379, %v1599
        %v1601 = vpop.f32.mrb[0].mxu0
        %v1602 = vpop.f32.mrb[0].mxu0
        %v1603 = vadd.f32 %v1379, %v1602
        %v1604 = vpop.f32.mrb[0].mxu0
        %1605 = vmatprep.mubr.bf16.mxu0 %v1335
        %1606 = vmatmul.mubr.bf16.gmra.mrb[0].mxu0 %v1334
        %v1607 = vpop.f32.mrb[0].mxu0
        %v1608 = vadd.f32 %v1379, %v1607
        %v1609 = vpop.f32.mrb[0].mxu0
        %v1610 = vpop.f32.mrb[0].mxu0
        %v1611 = vadd.f32 %v1379, %v1610
        %v1612 = vpop.f32.mrb[0].mxu0
        %1613 = vmatprep.mubr.bf16.mxu0 %v1337
        %1614 = vmatmul.mubr.bf16.gmra.mrb[0].mxu0 %v1336
        %v1615 = vpop.f32.mrb[0].mxu0
        %v1616 = vadd.f32 %v1379, %v1615
        %v1617 = vpop.f32.mrb[0].mxu0
        %v1618 = vpop.f32.mrb[0].mxu0
        %v1619 = vadd.f32 %v1379, %v1618
        %v1620 = vpop.f32.mrb[0].mxu0
        %1621 = vmatprep.mubr.bf16.mxu0 %v1339
        %1622 = vmatmul.mubr.bf16.gmra.mrb[0].mxu0 %v1338
        %v1623 = vpop.f32.mrb[0].mxu0
        %v1624 = vadd.f32 %v1379, %v1623
        %v1625 = vpop.f32.mrb[0].mxu0
        %v1626 = vpop.f32.mrb[0].mxu0
        %v1627 = vadd.f32 %v1379, %v1626
        %v1628 = vpop.f32.mrb[0].mxu0
        %1629 = vmatprep.mubr.bf16.mxu0 %v1341
        %1630 = vmatmul.mubr.bf16.gmra.mrb[0].mxu0 %v1340
        %v1631 = vpop.f32.mrb[0].mxu0
        %v1632 = vadd.f32 %v1379, %v1631
        %v1633 = vpop.f32.mrb[0].mxu0
        %v1634 = vpop.f32.mrb[0].mxu0
        %v1635 = vadd.f32 %v1379, %v1634
        %v1636 = vpop.f32.mrb[0].mxu0
        %1637 = vdwg.mxu0
        %v1638 = vmax.f32 %v1512, 0.0
        %v1639 = vmax.f32 %v1515, 0.0
        %v1640 = vmax.f32 %v1520, 0.0
        %v1641 = vmax.f32 %v1523, 0.0
        %v1642 = vmax.f32 %v1528, 0.0
        %v1643 = vmax.f32 %v1531, 0.0
        %v1644 = vmax.f32 %v1536, 0.0
        %v1645 = vmax.f32 %v1539, 0.0
        %v1646 = vmax.f32 %v1544, 0.0
        %v1647 = vmax.f32 %v1547, 0.0
        %v1648 = vmax.f32 %v1552, 0.0
        %v1649 = vmax.f32 %v1555, 0.0
        %v1650 = vmax.f32 %v1560, 0.0
        %v1651 = vmax.f32 %v1563, 0.0
        %v1652 = vmax.f32 %v1568, 0.0
        %v1653 = vmax.f32 %v1571, 0.0
        %v1654 = vmax.f32 %v1576, 0.0
        %v1655 = vmax.f32 %v1579, 0.0
        %v1656 = vmax.f32 %v1584, 0.0
        %v1657 = vmax.f32 %v1587, 0.0
        %v1658 = vmax.f32 %v1592, 0.0
        %v1659 = vmax.f32 %v1595, 0.0
        %v1660 = vmax.f32 %v1600, 0.0
        %v1661 = vmax.f32 %v1603, 0.0
        %v1662 = vmax.f32 %v1608, 0.0
        %v1663 = vmax.f32 %v1611, 0.0
        %v1664 = vmax.f32 %v1616, 0.0
        %v1665 = vmax.f32 %v1619, 0.0
        %v1666 = vmax.f32 %v1624, 0.0
        %v1667 = vmax.f32 %v1627, 0.0
        %v1668 = vmax.f32 %v1632, 0.0
        %v1669 = vmax.f32 %v1635, 0.0
        %1670 = vst [vmem:[%s368] sm:$0xff] %v1638
        %1671 = vst [vmem:[%s368 + $0x8] sm:$0xff] %v1639
        %1672 = vst [vmem:[%s368 + $0x10] sm:$0xff] %v1640
        %1673 = vst [vmem:[%s368 + $0x18] sm:$0xff] %v1641
        %1674 = vst [vmem:[%s368 + $0x20] sm:$0xff] %v1642
        %1675 = vst [vmem:[%s368 + $0x28] sm:$0xff] %v1643
        %1676 = vst [vmem:[%s368 + $0x30] sm:$0xff] %v1644
        %1677 = vst [vmem:[%s368 + $0x38] sm:$0xff] %v1645
        %1678 = vst [vmem:[%s368 + $0x40] sm:$0xff] %v1646
        %1679 = vst [vmem:[%s368 + $0x48] sm:$0xff] %v1647
        %1680 = vst [vmem:[%s368 + $0x50] sm:$0xff] %v1648
        %1681 = vst [vmem:[%s368 + $0x58] sm:$0xff] %v1649
        %1682 = vst [vmem:[%s368 + $0x60] sm:$0xff] %v1650
        %1683 = vst [vmem:[%s368 + $0x68] sm:$0xff] %v1651
        %1684 = vst [vmem:[%s368 + $0x70] sm:$0xff] %v1652
        %1685 = vst [vmem:[%s368 + $0x78] sm:$0xff] %v1653
        %1686 = vst [vmem:[%s368 + $0x80] sm:$0xff] %v1654
        %1687 = vst [vmem:[%s368 + $0x88] sm:$0xff] %v1655
        %1688 = vst [vmem:[%s368 + $0x90] sm:$0xff] %v1656
        %1689 = vst [vmem:[%s368 + $0x98] sm:$0xff] %v1657
        %1690 = vst [vmem:[%s368 + $0xa0] sm:$0xff] %v1658
        %1691 = vst [vmem:[%s368 + $0xa8] sm:$0xff] %v1659
        %1692 = vst [vmem:[%s368 + $0xb0] sm:$0xff] %v1660
        %1693 = vst [vmem:[%s368 + $0xb8] sm:$0xff] %v1661
        %1694 = vst [vmem:[%s368 + $0xc0] sm:$0xff] %v1662
        %1695 = vst [vmem:[%s368 + $0xc8] sm:$0xff] %v1663
        %1696 = vst [vmem:[%s368 + $0xd0] sm:$0xff] %v1664
        %1697 = vst [vmem:[%s368 + $0xd8] sm:$0xff] %v1665
        %1698 = vst [vmem:[%s368 + $0xe0] sm:$0xff] %v1666
        %1699 = vst [vmem:[%s368 + $0xe8] sm:$0xff] %v1667
        %1700 = vst [vmem:[%s368 + $0xf0] sm:$0xff] %v1668
        %1701 = vst [vmem:[%s368 + $0xf8] sm:$0xff] %v1669
        %s1702 = smul.u32 32, %s23
        %p1703 = scmp.lt.s32.totalorder %s22, 1
        %s1704 = scalar_select %p1703, %s22, 1
        %p1705 = scmp.lt.s32.totalorder %s1702, 95
        %s1706 = scalar_select %p1705, %s1702, 95
        %s1707 = smul.addr %s1704, 96
        %s1708 = sadd.s32 %s1706, %s1707
        %s1709 = smul.addr %s1708, 8
        %s1710 = scalar_lea.vmem %s7, %s1709
        // Predicated region
        $region87: #{segmentation_forward.1} parent=81 // pred_check
          %p1711 = pneg %p204
        $region88: #{segmentation_forward.1} parent=81 // pred_check_branch
          %1713 = sbr.rel (%p1711) target = $region90
        $region89: #{segmentation_forward.1} parent=81 // pred_region
          %s1714 = smul.u32 32, %s23
        $region90: #{segmentation_forward.1} parent=81 // pred_fallthru
          _
      $region82: #{segmentation_forward.1} parent=5 // pred_fallthru
        _
      %p1715 = scmp.le.s32.totalorder 2, %s13
      // Predicated region
      $region91: #{segmentation_forward.1} parent=5 // pred_check
        %p1716 = pneg %p1715
      $region92: #{segmentation_forward.1} parent=5 // pred_check_branch
        %1718 = sbr.rel (%p1716) target = $region94
      $region93: #{segmentation_forward.1} parent=5 // pred_region
        %s1719 = ssub.s32 %s13, 2
        // Predicated region
        $region95: #{segmentation_forward.1} parent=93 // pred_check
          %p1720 = pneg %p210
        $region96: #{segmentation_forward.1} parent=93 // pred_check_branch
          %1722 = sbr.rel (%p1720) target = $region98
        $region97: #{segmentation_forward.1} parent=93 // pred_region
          %s1723 = smul.u32 32, %s25
          %p1724 = scmp.lt.s32.totalorder %s24, 1
          %s1725 = scalar_select %p1724, %s24, 1
          %p1726 = scmp.lt.s32.totalorder %s1723, 95
          %s1727 = scalar_select %p1726, %s1723, 95
          %s1728 = smul.addr %s1725, 96
          %s1729 = sadd.s32 %s1727, %s1728
          %s1730 = smul.addr %s1729, 8
          %s1731 = scalar_lea.vmem %s7, %s1730
        $region98: #{segmentation_forward.1} parent=93 // pred_fallthru
          _
      $region94: #{segmentation_forward.1} parent=5 // pred_fallthru
        _
    $region6: #{segmentation_forward.1} parent=1 // loop_footer
      %s17 = sadd.s32 1, %s13
    $region7: #{segmentation_forward.1} parent=1 // loop_footer_branch
      %12 = sbr.rel target = $region3
    $region8: #{segmentation_forward.1} parent=1 // loop_exit
      _

</llo_original>
